<compile_context>
chip_gen: v7x
topology: tpu7x:2x2x1
jax: 0.10.0
libtpu: 0.0.40
codegen_flags: <defaults>
</compile_context>

<pallas_src>
import functools

import jax
import jax.numpy as jnp
from jax.experimental import pallas as pl
from jax.experimental.pallas import tpu as pltpu

LEAKY_SLOPE = 0.01   # nn.LeakyReLU default
LN_EPS = 1e-5        # nn.LayerNorm default
LANE = 128           # vreg lane width
SUBLANE = 8          # f32 sublane count
_MIN_SPLIT = 256     # split batch across >=2 grid steps once B >= 2*_MIN_SPLIT

_PARAM_ORDER = ("w1", "b1", "g1", "be1",
                "w2", "b2", "g2", "be2",
                "w3", "b3", "g3", "be3",
                "wo", "bo")


def _round_up(n, m):
    return ((n + m - 1) // m) * m


def _cdiv(a, b):
    return -(-a // b)


def _vmem_cap_bytes():
    """Generation-aware VMEM request cap (~80% of physical per-core VMEM)."""
    try:
        phys = int(pltpu.get_tpu_info().vmem_capacity_bytes)
    except Exception:
        phys = 64 * 2 ** 20          # conservative: v7x per-core physical VMEM
    return int(0.8 * phys)


def _choose_batch_tile(B, block_b):
    """Batch tile minimizing padding; prefers >=2 (even) grid steps for large B
    so both v7x TensorCores get balanced work."""
    nsteps = max(1, _cdiv(B, block_b))
    if nsteps == 1 and B >= 2 * _MIN_SPLIT:
        nsteps = 2
    if nsteps > 1 and nsteps % 2 == 1:
        nsteps += 1
    if nsteps == 1:
        return B, 1                  # exact tile == full batch extent (allowed)
    tb = _round_up(_cdiv(B, nsteps), SUBLANE)
    return tb, _cdiv(B, tb)


def _make_kernel(hidden_logical):
    """Fused MLP kernel; `hidden_logical` is the un-padded LayerNorm width."""
    inv_h = 1.0 / float(hidden_logical)

    def layer(h_bf16, w_ref, b_ref, g_ref, be_ref):
        # Linear on the MXU: bf16 inputs, f32 accumulation.
        h = jnp.dot(h_bf16, w_ref[...], preferred_element_type=jnp.float32)
        h = h + b_ref[...]
        # LayerNorm over the logical hidden dim.  Padded lanes of h are exactly
        # zero (zero weight columns + zero bias), so one pass of sum / sum-of-
        # squares over all lanes gives correct statistics when divided by the
        # logical width.
        s1 = jnp.sum(h, axis=-1, keepdims=True)
        s2 = jnp.sum(h * h, axis=-1, keepdims=True)
        mu = s1 * inv_h
        var = jnp.maximum(s2 * inv_h - mu * mu, 0.0)
        scale = g_ref[...] * jax.lax.rsqrt(var + LN_EPS)   # gamma folded in
        h = (h - mu) * scale + be_ref[...]
        # LeakyReLU (slope in (0,1) -> max(h, slope*h) is exact).
        h = jnp.maximum(h, LEAKY_SLOPE * h)
        # Dropout: eval-mode identity (see TODO at top of file).
        return h.astype(jnp.bfloat16)   # bf16 feed for the next MXU matmul

    def kernel(x_ref,
               w1_ref, b1_ref, g1_ref, be1_ref,
               w2_ref, b2_ref, g2_ref, be2_ref,
               w3_ref, b3_ref, g3_ref, be3_ref,
               wo_ref, bo_ref,
               o_ref):
        h = layer(x_ref[...], w1_ref, b1_ref, g1_ref, be1_ref)
        h = layer(h, w2_ref, b2_ref, g2_ref, be2_ref)
        h = layer(h, w3_ref, b3_ref, g3_ref, be3_ref)
        out = jnp.dot(h, wo_ref[...], preferred_element_type=jnp.float32)
        out = out + bo_ref[...]
        o_ref[...] = out.astype(o_ref.dtype)

    return kernel


def prepare_params(params):
    """Pad parameters ONCE (lane-aligned) and cast matmul weights to bf16.

    Zero-padded weight rows/columns, biases and LN gamma/beta keep the padded
    lanes exactly zero through every layer, so LN statistics stay exact.
    Returns (padded_param_dict, hidden_size, out_size).
    """
    in_size, hidden = params["w1"].shape
    out_size = params["wo"].shape[1]
    INp = _round_up(in_size, LANE)
    Hp = _round_up(hidden, LANE)
    OUTp = _round_up(out_size, LANE)

    def pad2(a, rows, cols, dtype):
        a = jnp.asarray(a, jnp.float32)
        a = jnp.pad(a, ((0, rows - a.shape[0]), (0, cols - a.shape[1])))
        return a.astype(dtype)

    pp = {
        "w1": pad2(params["w1"], INp, Hp, jnp.bfloat16),
        "b1": pad2(params["b1"], 1, Hp, jnp.float32),
        "g1": pad2(params["g1"], 1, Hp, jnp.float32),
        "be1": pad2(params["be1"], 1, Hp, jnp.float32),
        "w2": pad2(params["w2"], Hp, Hp, jnp.bfloat16),
        "b2": pad2(params["b2"], 1, Hp, jnp.float32),
        "g2": pad2(params["g2"], 1, Hp, jnp.float32),
        "be2": pad2(params["be2"], 1, Hp, jnp.float32),
        "w3": pad2(params["w3"], Hp, Hp, jnp.bfloat16),
        "b3": pad2(params["b3"], 1, Hp, jnp.float32),
        "g3": pad2(params["g3"], 1, Hp, jnp.float32),
        "be3": pad2(params["be3"], 1, Hp, jnp.float32),
        "wo": pad2(params["wo"], Hp, OUTp, jnp.bfloat16),
        "bo": pad2(params["bo"], 1, OUTp, jnp.float32),
    }
    return pp, int(hidden), int(out_size)


@functools.partial(
    jax.jit,
    static_argnames=("hidden", "out_size", "block_b", "single_buffer_params"))
def _forward_jit(x, pp, *, hidden, out_size, block_b, single_buffer_params):
    B = x.shape[0]
    INp, Hp = pp["w1"].shape
    OUTp = pp["wo"].shape[1]

    TB, grid_b = _choose_batch_tile(B, block_b)

    # Only the feature dim of x needs padding (fuses under jit); the batch dim
    # is left ragged and handled by Pallas' masked last tile.
    xp = jnp.pad(x, ((0, 0), (0, INp - x.shape[1]))).astype(jnp.bfloat16)

    param_args = tuple(pp[n] for n in _PARAM_ORDER)

    x_spec = pl.BlockSpec((TB, INp), lambda i: (i, 0))
    o_spec = pl.BlockSpec((TB, OUTp), lambda i: (i, 0))
    if single_buffer_params:
        # Grid-invariant operands: single VMEM buffer (no double-buffering).
        p_specs = [pl.BlockSpec(a.shape, lambda i: (0, 0),
                                pipeline_mode=pl.Buffered(1))
                   for a in param_args]
    else:
        p_specs = [pl.BlockSpec(a.shape, lambda i: (0, 0)) for a in param_args]

    # VMEM budget: params (resident) + double-buffered activation tiles +
    # in-kernel f32 intermediates, with headroom, capped generation-aware.
    param_bytes = sum(int(a.size) * a.dtype.itemsize for a in param_args)
    act_bytes = TB * INp * 2 + TB * OUTp * 4
    scratch_bytes = 8 * TB * Hp * 4
    pbuf = 1 if single_buffer_params else 2
    needed = pbuf * param_bytes + 2 * act_bytes + scratch_bytes
    vmem_limit = int(min(_vmem_cap_bytes(), max(32 * 2 ** 20, 2 * needed)))

    flops = 2 * B * (INp * Hp + 2 * Hp * Hp + Hp * OUTp)
    cost = pl.CostEstimate(
        flops=flops,
        transcendentals=3 * B,  # one rsqrt per row per LayerNorm
        bytes_accessed=int(xp.size * 2 + param_bytes + B * OUTp * 4),
    )

    out = pl.pallas_call(
        _make_kernel(hidden),
        out_shape=jax.ShapeDtypeStruct((B, OUTp), jnp.float32),
        grid=(grid_b,),
        in_specs=[x_spec] + p_specs,
        out_specs=o_spec,
        compiler_params=pltpu.CompilerParams(
            dimension_semantics=("parallel",),
            vmem_limit_bytes=vmem_limit,
        ),
        cost_estimate=cost,
    )(xp, *param_args)

    return out[:, :out_size]


def net_forward(x, prepared, *, block_b=1024, single_buffer_params=True):
    """x: (B, input_size) float32; prepared = prepare_params(params)."""
    pp, hidden, out_size = prepared
    return _forward_jit(x, pp, hidden=hidden, out_size=out_size,
                        block_b=block_b,
                        single_buffer_params=single_buffer_params)


def init_params(key, input_size, hidden_size, out_size):
    """Deterministic init mimicking PyTorch defaults.

    nn.Linear: weight & bias ~ U(-1/sqrt(fan_in), 1/sqrt(fan_in))
    nn.LayerNorm: weight = 1, bias = 0
    Linear weights are stored transposed: (in, out).
    """
    def linear(k, fan_in, fan_out):
        kw, kb = jax.random.split(k)
        bound = 1.0 / jnp.sqrt(fan_in)
        w = jax.random.uniform(kw, (fan_in, fan_out), jnp.float32, -bound, bound)
        b = jax.random.uniform(kb, (1, fan_out), jnp.float32, -bound, bound)
        return w, b

    k1, k2, k3, k4 = jax.random.split(key, 4)
    w1, b1 = linear(k1, input_size, hidden_size)
    w2, b2 = linear(k2, hidden_size, hidden_size)
    w3, b3 = linear(k3, hidden_size, hidden_size)
    wo, bo = linear(k4, hidden_size, out_size)
    ones = jnp.ones((1, hidden_size), jnp.float32)
    zeros = jnp.zeros((1, hidden_size), jnp.float32)
    return dict(
        w1=w1, b1=b1, g1=ones, be1=zeros,
        w2=w2, b2=b2, g2=ones, be2=zeros,
        w3=w3, b3=b3, g3=ones, be3=zeros,
        wo=wo, bo=bo,
    )


def net_forward_ref(x, p):
    """Pure-JAX f32 reference of the same forward (eval-mode dropout)."""
    def layer(h, w, b, g, be):
        h = h @ w + b
        mu = jnp.mean(h, axis=-1, keepdims=True)
        var = jnp.mean((h - mu) ** 2, axis=-1, keepdims=True)
        h = (h - mu) / jnp.sqrt(var + LN_EPS) * g + be
        return jnp.where(h >= 0, h, LEAKY_SLOPE * h)

    h = layer(x, p["w1"], p["b1"], p["g1"], p["be1"])
    h = layer(h, p["w2"], p["b2"], p["g2"], p["be2"])
    h = layer(h, p["w3"], p["b3"], p["g3"], p["be3"])
    return h @ p["wo"] + p["bo"]


if __name__ == "__main__":
    key = jax.random.PRNGKey(0)
    _single_buffer = [True]

    def run(x, prepared, block_b):
        # Prefer single-buffered invariant params; fall back to default
        # double-buffering if this Pallas build rejects pl.Buffered(1).
        if _single_buffer[0]:
            try:
                return jax.block_until_ready(
                    net_forward(x, prepared, block_b=block_b,
                                single_buffer_params=True))
            except Exception:
                _single_buffer[0] = False
        return jax.block_until_ready(
            net_forward(x, prepared, block_b=block_b,
                        single_buffer_params=False))

    def check(batch, in_size, hidden, out_size, block_b=1024):
        kx, kp = jax.random.split(jax.random.fold_in(key, batch * 131 + hidden))
        x = jax.random.normal(kx, (batch, in_size), jnp.float32)
        params = init_params(kp, in_size, hidden, out_size)
        prepared = prepare_params(params)
        out = run(x, prepared, block_b)
        ref = net_forward_ref(x, params)
        assert out.shape == (batch, out_size)
        # bf16 MXU inputs -> scale-relative max-error bound vs the f32 ref.
        err = float(jnp.max(jnp.abs(out - ref)))
        scale = float(jnp.max(jnp.abs(ref))) + 1.0
        assert err <= 5e-2 * scale, (
            f"mismatch vs JAX reference for shape "
            f"{(batch, in_size, hidden, out_size)}: err={err}, scale={scale}")

    # Small shapes consistent with the module: (batch, input_size) input.
    check(16, 8, 32, 4)
    # Module's literal hidden_size=5 — LN over a padded lane dim, ragged batch.
    check(10, 7, 5, 3)
    # Larger batch — multi-step batch grid, balanced tiles, ragged last tile.
    check(1040, 8, 32, 4, block_b=512)

    print("KERNEL_OK")
</pallas_src>

<mosaic_0001>
module attributes {stable_mosaic.version = 11 : i64} {
  func.func @kernel(%arg0: i32, %arg1: memref<16x128xbf16, #tpu.memory_space<vmem>>, %arg2: memref<128x128xbf16, #tpu.memory_space<vmem>>, %arg3: memref<1x128xf32, #tpu.memory_space<vmem>>, %arg4: memref<1x128xf32, #tpu.memory_space<vmem>>, %arg5: memref<1x128xf32, #tpu.memory_space<vmem>>, %arg6: memref<128x128xbf16, #tpu.memory_space<vmem>>, %arg7: memref<1x128xf32, #tpu.memory_space<vmem>>, %arg8: memref<1x128xf32, #tpu.memory_space<vmem>>, %arg9: memref<1x128xf32, #tpu.memory_space<vmem>>, %arg10: memref<128x128xbf16, #tpu.memory_space<vmem>>, %arg11: memref<1x128xf32, #tpu.memory_space<vmem>>, %arg12: memref<1x128xf32, #tpu.memory_space<vmem>>, %arg13: memref<1x128xf32, #tpu.memory_space<vmem>>, %arg14: memref<128x128xbf16, #tpu.memory_space<vmem>>, %arg15: memref<1x128xf32, #tpu.memory_space<vmem>>, %arg16: memref<16x128xf32, #tpu.memory_space<vmem>>) attributes {dimension_semantics = [#tpu.dimension_semantics<parallel>], iteration_bounds = array<i64: 1>, scalar_prefetch = 0 : i64, scratch_operands = 0 : i64, tpu.core_type = #tpu.core_type<tc>, window_params = [{transform_indices = @transform_0, window_bounds = array<i64: 16, 128>}, {pipeline_mode = #tpu.pipeline_mode<synchronous>, transform_indices = @transform_1, window_bounds = array<i64: 128, 128>}, {pipeline_mode = #tpu.pipeline_mode<synchronous>, transform_indices = @transform_2, window_bounds = array<i64: 1, 128>}, {pipeline_mode = #tpu.pipeline_mode<synchronous>, transform_indices = @transform_3, window_bounds = array<i64: 1, 128>}, {pipeline_mode = #tpu.pipeline_mode<synchronous>, transform_indices = @transform_4, window_bounds = array<i64: 1, 128>}, {pipeline_mode = #tpu.pipeline_mode<synchronous>, transform_indices = @transform_5, window_bounds = array<i64: 128, 128>}, {pipeline_mode = #tpu.pipeline_mode<synchronous>, transform_indices = @transform_6, window_bounds = array<i64: 1, 128>}, {pipeline_mode = #tpu.pipeline_mode<synchronous>, transform_indices = @transform_7, window_bounds = array<i64: 1, 128>}, {pipeline_mode = #tpu.pipeline_mode<synchronous>, transform_indices = @transform_8, window_bounds = array<i64: 1, 128>}, {pipeline_mode = #tpu.pipeline_mode<synchronous>, transform_indices = @transform_9, window_bounds = array<i64: 128, 128>}, {pipeline_mode = #tpu.pipeline_mode<synchronous>, transform_indices = @transform_10, window_bounds = array<i64: 1, 128>}, {pipeline_mode = #tpu.pipeline_mode<synchronous>, transform_indices = @transform_11, window_bounds = array<i64: 1, 128>}, {pipeline_mode = #tpu.pipeline_mode<synchronous>, transform_indices = @transform_12, window_bounds = array<i64: 1, 128>}, {pipeline_mode = #tpu.pipeline_mode<synchronous>, transform_indices = @transform_13, window_bounds = array<i64: 128, 128>}, {pipeline_mode = #tpu.pipeline_mode<synchronous>, transform_indices = @transform_14, window_bounds = array<i64: 1, 128>}, {transform_indices = @transform_15, window_bounds = array<i64: 16, 128>}]} {
    %c0 = arith.constant 0 : index
    %c0_0 = arith.constant 0 : index
    %0 = vector.load %arg1[%c0, %c0_0] : memref<16x128xbf16, #tpu.memory_space<vmem>>, vector<16x128xbf16>
    %c0_1 = arith.constant 0 : index
    %c0_2 = arith.constant 0 : index
    %1 = vector.load %arg2[%c0_1, %c0_2] : memref<128x128xbf16, #tpu.memory_space<vmem>>, vector<128x128xbf16>
    %cst = arith.constant dense<0.000000e+00> : vector<16x128xf32>
    %2 = tpu.matmul %0, %1, %cst {dimension_numbers = #tpu.dot_dimension_numbers<[1], [0], [0], [1], [0, 0, 1, 1], [], []>} : vector<16x128xbf16>, vector<128x128xbf16>, vector<16x128xf32> -> vector<16x128xf32>
    %c0_3 = arith.constant 0 : index
    %c0_4 = arith.constant 0 : index
    %3 = vector.load %arg3[%c0_3, %c0_4] : memref<1x128xf32, #tpu.memory_space<vmem>>, vector<1x128xf32>
    %4 = vector.broadcast %3 : vector<1x128xf32> to vector<16x128xf32>
    %5 = arith.addf %2, %4 : vector<16x128xf32>
    %cst_5 = arith.constant dense<0.000000e+00> : vector<16xf32>
    %6 = vector.multi_reduction <add>, %5, %cst_5 [1] : vector<16x128xf32> to vector<16xf32>
    %7 = vector.shape_cast %6 : vector<16xf32> to vector<16x1xf32>
    %8 = arith.mulf %5, %5 : vector<16x128xf32>
    %cst_6 = arith.constant dense<0.000000e+00> : vector<16xf32>
    %9 = vector.multi_reduction <add>, %8, %cst_6 [1] : vector<16x128xf32> to vector<16xf32>
    %10 = vector.shape_cast %9 : vector<16xf32> to vector<16x1xf32>
    %cst_7 = arith.constant 3.125000e-02 : f32
    %11 = vector.broadcast %cst_7 : f32 to vector<16x1xf32>
    %12 = arith.mulf %7, %11 : vector<16x1xf32>
    %cst_8 = arith.constant 3.125000e-02 : f32
    %13 = vector.broadcast %cst_8 : f32 to vector<16x1xf32>
    %14 = arith.mulf %10, %13 : vector<16x1xf32>
    %15 = arith.mulf %12, %12 : vector<16x1xf32>
    %16 = arith.subf %14, %15 : vector<16x1xf32>
    %cst_9 = arith.constant 0.000000e+00 : f32
    %17 = vector.broadcast %cst_9 : f32 to vector<16x1xf32>
    %18 = arith.maximumf %16, %17 : vector<16x1xf32>
    %c0_10 = arith.constant 0 : index
    %c0_11 = arith.constant 0 : index
    %19 = vector.load %arg4[%c0_10, %c0_11] : memref<1x128xf32, #tpu.memory_space<vmem>>, vector<1x128xf32>
    %cst_12 = arith.constant 9.99999974E-6 : f32
    %20 = vector.broadcast %cst_12 : f32 to vector<16x1xf32>
    %21 = arith.addf %18, %20 : vector<16x1xf32>
    %22 = math.rsqrt %21 : vector<16x1xf32>
    %23 = vector.broadcast %19 : vector<1x128xf32> to vector<16x128xf32>
    %24 = vector.broadcast %22 : vector<16x1xf32> to vector<16x128xf32>
    %25 = arith.mulf %23, %24 : vector<16x128xf32>
    %26 = vector.broadcast %12 : vector<16x1xf32> to vector<16x128xf32>
    %27 = arith.subf %5, %26 : vector<16x128xf32>
    %28 = arith.mulf %27, %25 : vector<16x128xf32>
    %c0_13 = arith.constant 0 : index
    %c0_14 = arith.constant 0 : index
    %29 = vector.load %arg5[%c0_13, %c0_14] : memref<1x128xf32, #tpu.memory_space<vmem>>, vector<1x128xf32>
    %30 = vector.broadcast %29 : vector<1x128xf32> to vector<16x128xf32>
    %31 = arith.addf %28, %30 : vector<16x128xf32>
    %cst_15 = arith.constant 0.00999999977 : f32
    %32 = vector.broadcast %cst_15 : f32 to vector<16x128xf32>
    %33 = arith.mulf %32, %31 : vector<16x128xf32>
    %34 = arith.maximumf %31, %33 : vector<16x128xf32>
    %35 = arith.truncf %34 : vector<16x128xf32> to vector<16x128xbf16>
    %c0_16 = arith.constant 0 : index
    %c0_17 = arith.constant 0 : index
    %36 = vector.load %arg6[%c0_16, %c0_17] : memref<128x128xbf16, #tpu.memory_space<vmem>>, vector<128x128xbf16>
    %cst_18 = arith.constant dense<0.000000e+00> : vector<16x128xf32>
    %37 = tpu.matmul %35, %36, %cst_18 {dimension_numbers = #tpu.dot_dimension_numbers<[1], [0], [0], [1], [0, 0, 1, 1], [], []>} : vector<16x128xbf16>, vector<128x128xbf16>, vector<16x128xf32> -> vector<16x128xf32>
    %c0_19 = arith.constant 0 : index
    %c0_20 = arith.constant 0 : index
    %38 = vector.load %arg7[%c0_19, %c0_20] : memref<1x128xf32, #tpu.memory_space<vmem>>, vector<1x128xf32>
    %39 = vector.broadcast %38 : vector<1x128xf32> to vector<16x128xf32>
    %40 = arith.addf %37, %39 : vector<16x128xf32>
    %cst_21 = arith.constant dense<0.000000e+00> : vector<16xf32>
    %41 = vector.multi_reduction <add>, %40, %cst_21 [1] : vector<16x128xf32> to vector<16xf32>
    %42 = vector.shape_cast %41 : vector<16xf32> to vector<16x1xf32>
    %43 = arith.mulf %40, %40 : vector<16x128xf32>
    %cst_22 = arith.constant dense<0.000000e+00> : vector<16xf32>
    %44 = vector.multi_reduction <add>, %43, %cst_22 [1] : vector<16x128xf32> to vector<16xf32>
    %45 = vector.shape_cast %44 : vector<16xf32> to vector<16x1xf32>
    %cst_23 = arith.constant 3.125000e-02 : f32
    %46 = vector.broadcast %cst_23 : f32 to vector<16x1xf32>
    %47 = arith.mulf %42, %46 : vector<16x1xf32>
    %cst_24 = arith.constant 3.125000e-02 : f32
    %48 = vector.broadcast %cst_24 : f32 to vector<16x1xf32>
    %49 = arith.mulf %45, %48 : vector<16x1xf32>
    %50 = arith.mulf %47, %47 : vector<16x1xf32>
    %51 = arith.subf %49, %50 : vector<16x1xf32>
    %cst_25 = arith.constant 0.000000e+00 : f32
    %52 = vector.broadcast %cst_25 : f32 to vector<16x1xf32>
    %53 = arith.maximumf %51, %52 : vector<16x1xf32>
    %c0_26 = arith.constant 0 : index
    %c0_27 = arith.constant 0 : index
    %54 = vector.load %arg8[%c0_26, %c0_27] : memref<1x128xf32, #tpu.memory_space<vmem>>, vector<1x128xf32>
    %cst_28 = arith.constant 9.99999974E-6 : f32
    %55 = vector.broadcast %cst_28 : f32 to vector<16x1xf32>
    %56 = arith.addf %53, %55 : vector<16x1xf32>
    %57 = math.rsqrt %56 : vector<16x1xf32>
    %58 = vector.broadcast %54 : vector<1x128xf32> to vector<16x128xf32>
    %59 = vector.broadcast %57 : vector<16x1xf32> to vector<16x128xf32>
    %60 = arith.mulf %58, %59 : vector<16x128xf32>
    %61 = vector.broadcast %47 : vector<16x1xf32> to vector<16x128xf32>
    %62 = arith.subf %40, %61 : vector<16x128xf32>
    %63 = arith.mulf %62, %60 : vector<16x128xf32>
    %c0_29 = arith.constant 0 : index
    %c0_30 = arith.constant 0 : index
    %64 = vector.load %arg9[%c0_29, %c0_30] : memref<1x128xf32, #tpu.memory_space<vmem>>, vector<1x128xf32>
    %65 = vector.broadcast %64 : vector<1x128xf32> to vector<16x128xf32>
    %66 = arith.addf %63, %65 : vector<16x128xf32>
    %cst_31 = arith.constant 0.00999999977 : f32
    %67 = vector.broadcast %cst_31 : f32 to vector<16x128xf32>
    %68 = arith.mulf %67, %66 : vector<16x128xf32>
    %69 = arith.maximumf %66, %68 : vector<16x128xf32>
    %70 = arith.truncf %69 : vector<16x128xf32> to vector<16x128xbf16>
    %c0_32 = arith.constant 0 : index
    %c0_33 = arith.constant 0 : index
    %71 = vector.load %arg10[%c0_32, %c0_33] : memref<128x128xbf16, #tpu.memory_space<vmem>>, vector<128x128xbf16>
    %cst_34 = arith.constant dense<0.000000e+00> : vector<16x128xf32>
    %72 = tpu.matmul %70, %71, %cst_34 {dimension_numbers = #tpu.dot_dimension_numbers<[1], [0], [0], [1], [0, 0, 1, 1], [], []>} : vector<16x128xbf16>, vector<128x128xbf16>, vector<16x128xf32> -> vector<16x128xf32>
    %c0_35 = arith.constant 0 : index
    %c0_36 = arith.constant 0 : index
    %73 = vector.load %arg11[%c0_35, %c0_36] : memref<1x128xf32, #tpu.memory_space<vmem>>, vector<1x128xf32>
    %74 = vector.broadcast %73 : vector<1x128xf32> to vector<16x128xf32>
    %75 = arith.addf %72, %74 : vector<16x128xf32>
    %cst_37 = arith.constant dense<0.000000e+00> : vector<16xf32>
    %76 = vector.multi_reduction <add>, %75, %cst_37 [1] : vector<16x128xf32> to vector<16xf32>
    %77 = vector.shape_cast %76 : vector<16xf32> to vector<16x1xf32>
    %78 = arith.mulf %75, %75 : vector<16x128xf32>
    %cst_38 = arith.constant dense<0.000000e+00> : vector<16xf32>
    %79 = vector.multi_reduction <add>, %78, %cst_38 [1] : vector<16x128xf32> to vector<16xf32>
    %80 = vector.shape_cast %79 : vector<16xf32> to vector<16x1xf32>
    %cst_39 = arith.constant 3.125000e-02 : f32
    %81 = vector.broadcast %cst_39 : f32 to vector<16x1xf32>
    %82 = arith.mulf %77, %81 : vector<16x1xf32>
    %cst_40 = arith.constant 3.125000e-02 : f32
    %83 = vector.broadcast %cst_40 : f32 to vector<16x1xf32>
    %84 = arith.mulf %80, %83 : vector<16x1xf32>
    %85 = arith.mulf %82, %82 : vector<16x1xf32>
    %86 = arith.subf %84, %85 : vector<16x1xf32>
    %cst_41 = arith.constant 0.000000e+00 : f32
    %87 = vector.broadcast %cst_41 : f32 to vector<16x1xf32>
    %88 = arith.maximumf %86, %87 : vector<16x1xf32>
    %c0_42 = arith.constant 0 : index
    %c0_43 = arith.constant 0 : index
    %89 = vector.load %arg12[%c0_42, %c0_43] : memref<1x128xf32, #tpu.memory_space<vmem>>, vector<1x128xf32>
    %cst_44 = arith.constant 9.99999974E-6 : f32
    %90 = vector.broadcast %cst_44 : f32 to vector<16x1xf32>
    %91 = arith.addf %88, %90 : vector<16x1xf32>
    %92 = math.rsqrt %91 : vector<16x1xf32>
    %93 = vector.broadcast %89 : vector<1x128xf32> to vector<16x128xf32>
    %94 = vector.broadcast %92 : vector<16x1xf32> to vector<16x128xf32>
    %95 = arith.mulf %93, %94 : vector<16x128xf32>
    %96 = vector.broadcast %82 : vector<16x1xf32> to vector<16x128xf32>
    %97 = arith.subf %75, %96 : vector<16x128xf32>
    %98 = arith.mulf %97, %95 : vector<16x128xf32>
    %c0_45 = arith.constant 0 : index
    %c0_46 = arith.constant 0 : index
    %99 = vector.load %arg13[%c0_45, %c0_46] : memref<1x128xf32, #tpu.memory_space<vmem>>, vector<1x128xf32>
    %100 = vector.broadcast %99 : vector<1x128xf32> to vector<16x128xf32>
    %101 = arith.addf %98, %100 : vector<16x128xf32>
    %cst_47 = arith.constant 0.00999999977 : f32
    %102 = vector.broadcast %cst_47 : f32 to vector<16x128xf32>
    %103 = arith.mulf %102, %101 : vector<16x128xf32>
    %104 = arith.maximumf %101, %103 : vector<16x128xf32>
    %105 = arith.truncf %104 : vector<16x128xf32> to vector<16x128xbf16>
    %c0_48 = arith.constant 0 : index
    %c0_49 = arith.constant 0 : index
    %106 = vector.load %arg14[%c0_48, %c0_49] : memref<128x128xbf16, #tpu.memory_space<vmem>>, vector<128x128xbf16>
    %cst_50 = arith.constant dense<0.000000e+00> : vector<16x128xf32>
    %107 = tpu.matmul %105, %106, %cst_50 {dimension_numbers = #tpu.dot_dimension_numbers<[1], [0], [0], [1], [0, 0, 1, 1], [], []>} : vector<16x128xbf16>, vector<128x128xbf16>, vector<16x128xf32> -> vector<16x128xf32>
    %c0_51 = arith.constant 0 : index
    %c0_52 = arith.constant 0 : index
    %108 = vector.load %arg15[%c0_51, %c0_52] : memref<1x128xf32, #tpu.memory_space<vmem>>, vector<1x128xf32>
    %109 = vector.broadcast %108 : vector<1x128xf32> to vector<16x128xf32>
    %110 = arith.addf %107, %109 : vector<16x128xf32>
    %c0_53 = arith.constant 0 : index
    %c0_54 = arith.constant 0 : index
    %111 = vector.load %arg16[%c0_53, %c0_54] : memref<16x128xf32, #tpu.memory_space<vmem>>, vector<16x128xf32>
    tpu.vector_store %arg16[%c0_53, %c0_54], %110 {strides = array<i32>} : memref<16x128xf32, #tpu.memory_space<vmem>>, vector<16x128xf32>,
    return
  }
  func.func @transform_0(%arg0: i32) -> (i32, i32) {
    %c0_i32 = arith.constant 0 : i32
    %c0_i32_0 = arith.constant 0 : i32
    return %arg0, %c0_i32 : i32, i32
  }
  func.func @transform_1(%arg0: i32) -> (i32, i32) {
    %c0_i32 = arith.constant 0 : i32
    %c0_i32_0 = arith.constant 0 : i32
    %c0_i32_1 = arith.constant 0 : i32
    return %c0_i32, %c0_i32_0 : i32, i32
  }
  func.func @transform_2(%arg0: i32) -> (i32, i32) {
    %c0_i32 = arith.constant 0 : i32
    %c0_i32_0 = arith.constant 0 : i32
    %c0_i32_1 = arith.constant 0 : i32
    return %c0_i32, %c0_i32_0 : i32, i32
  }
  func.func @transform_3(%arg0: i32) -> (i32, i32) {
    %c0_i32 = arith.constant 0 : i32
    %c0_i32_0 = arith.constant 0 : i32
    %c0_i32_1 = arith.constant 0 : i32
    return %c0_i32, %c0_i32_0 : i32, i32
  }
  func.func @transform_4(%arg0: i32) -> (i32, i32) {
    %c0_i32 = arith.constant 0 : i32
    %c0_i32_0 = arith.constant 0 : i32
    %c0_i32_1 = arith.constant 0 : i32
    return %c0_i32, %c0_i32_0 : i32, i32
  }
  func.func @transform_5(%arg0: i32) -> (i32, i32) {
    %c0_i32 = arith.constant 0 : i32
    %c0_i32_0 = arith.constant 0 : i32
    %c0_i32_1 = arith.constant 0 : i32
    return %c0_i32, %c0_i32_0 : i32, i32
  }
  func.func @transform_6(%arg0: i32) -> (i32, i32) {
    %c0_i32 = arith.constant 0 : i32
    %c0_i32_0 = arith.constant 0 : i32
    %c0_i32_1 = arith.constant 0 : i32
    return %c0_i32, %c0_i32_0 : i32, i32
  }
  func.func @transform_7(%arg0: i32) -> (i32, i32) {
    %c0_i32 = arith.constant 0 : i32
    %c0_i32_0 = arith.constant 0 : i32
    %c0_i32_1 = arith.constant 0 : i32
    return %c0_i32, %c0_i32_0 : i32, i32
  }
  func.func @transform_8(%arg0: i32) -> (i32, i32) {
    %c0_i32 = arith.constant 0 : i32
    %c0_i32_0 = arith.constant 0 : i32
    %c0_i32_1 = arith.constant 0 : i32
    return %c0_i32, %c0_i32_0 : i32, i32
  }
  func.func @transform_9(%arg0: i32) -> (i32, i32) {
    %c0_i32 = arith.constant 0 : i32
    %c0_i32_0 = arith.constant 0 : i32
    %c0_i32_1 = arith.constant 0 : i32
    return %c0_i32, %c0_i32_0 : i32, i32
  }
  func.func @transform_10(%arg0: i32) -> (i32, i32) {
    %c0_i32 = arith.constant 0 : i32
    %c0_i32_0 = arith.constant 0 : i32
    %c0_i32_1 = arith.constant 0 : i32
    return %c0_i32, %c0_i32_0 : i32, i32
  }
  func.func @transform_11(%arg0: i32) -> (i32, i32) {
    %c0_i32 = arith.constant 0 : i32
    %c0_i32_0 = arith.constant 0 : i32
    %c0_i32_1 = arith.constant 0 : i32
    return %c0_i32, %c0_i32_0 : i32, i32
  }
  func.func @transform_12(%arg0: i32) -> (i32, i32) {
    %c0_i32 = arith.constant 0 : i32
    %c0_i32_0 = arith.constant 0 : i32
    %c0_i32_1 = arith.constant 0 : i32
    return %c0_i32, %c0_i32_0 : i32, i32
  }
  func.func @transform_13(%arg0: i32) -> (i32, i32) {
    %c0_i32 = arith.constant 0 : i32
    %c0_i32_0 = arith.constant 0 : i32
    %c0_i32_1 = arith.constant 0 : i32
    return %c0_i32, %c0_i32_0 : i32, i32
  }
  func.func @transform_14(%arg0: i32) -> (i32, i32) {
    %c0_i32 = arith.constant 0 : i32
    %c0_i32_0 = arith.constant 0 : i32
    %c0_i32_1 = arith.constant 0 : i32
    return %c0_i32, %c0_i32_0 : i32, i32
  }
  func.func @transform_15(%arg0: i32) -> (i32, i32) {
    %c0_i32 = arith.constant 0 : i32
    %c0_i32_0 = arith.constant 0 : i32
    return %arg0, %c0_i32 : i32, i32
  }
}

module attributes {stable_mosaic.version = 11 : i64} {
  func.func @kernel(%arg0: i32, %arg1: memref<16x128xbf16, #tpu.memory_space<vmem>>, %arg2: memref<128x128xbf16, #tpu.memory_space<vmem>>, %arg3: memref<1x128xf32, #tpu.memory_space<vmem>>, %arg4: memref<1x128xf32, #tpu.memory_space<vmem>>, %arg5: memref<1x128xf32, #tpu.memory_space<vmem>>, %arg6: memref<128x128xbf16, #tpu.memory_space<vmem>>, %arg7: memref<1x128xf32, #tpu.memory_space<vmem>>, %arg8: memref<1x128xf32, #tpu.memory_space<vmem>>, %arg9: memref<1x128xf32, #tpu.memory_space<vmem>>, %arg10: memref<128x128xbf16, #tpu.memory_space<vmem>>, %arg11: memref<1x128xf32, #tpu.memory_space<vmem>>, %arg12: memref<1x128xf32, #tpu.memory_space<vmem>>, %arg13: memref<1x128xf32, #tpu.memory_space<vmem>>, %arg14: memref<128x128xbf16, #tpu.memory_space<vmem>>, %arg15: memref<1x128xf32, #tpu.memory_space<vmem>>, %arg16: memref<16x128xf32, #tpu.memory_space<vmem>>) attributes {dimension_semantics = [#tpu.dimension_semantics<parallel>], iteration_bounds = array<i64: 1>, scalar_prefetch = 0 : i64, scratch_operands = 0 : i64, tpu.core_type = #tpu.core_type<tc>, window_params = [{transform_indices = @transform_0, window_bounds = array<i64: 16, 128>}, {pipeline_mode = #tpu.pipeline_mode<synchronous>, transform_indices = @transform_1, window_bounds = array<i64: 128, 128>}, {pipeline_mode = #tpu.pipeline_mode<synchronous>, transform_indices = @transform_2, window_bounds = array<i64: 1, 128>}, {pipeline_mode = #tpu.pipeline_mode<synchronous>, transform_indices = @transform_3, window_bounds = array<i64: 1, 128>}, {pipeline_mode = #tpu.pipeline_mode<synchronous>, transform_indices = @transform_4, window_bounds = array<i64: 1, 128>}, {pipeline_mode = #tpu.pipeline_mode<synchronous>, transform_indices = @transform_5, window_bounds = array<i64: 128, 128>}, {pipeline_mode = #tpu.pipeline_mode<synchronous>, transform_indices = @transform_6, window_bounds = array<i64: 1, 128>}, {pipeline_mode = #tpu.pipeline_mode<synchronous>, transform_indices = @transform_7, window_bounds = array<i64: 1, 128>}, {pipeline_mode = #tpu.pipeline_mode<synchronous>, transform_indices = @transform_8, window_bounds = array<i64: 1, 128>}, {pipeline_mode = #tpu.pipeline_mode<synchronous>, transform_indices = @transform_9, window_bounds = array<i64: 128, 128>}, {pipeline_mode = #tpu.pipeline_mode<synchronous>, transform_indices = @transform_10, window_bounds = array<i64: 1, 128>}, {pipeline_mode = #tpu.pipeline_mode<synchronous>, transform_indices = @transform_11, window_bounds = array<i64: 1, 128>}, {pipeline_mode = #tpu.pipeline_mode<synchronous>, transform_indices = @transform_12, window_bounds = array<i64: 1, 128>}, {pipeline_mode = #tpu.pipeline_mode<synchronous>, transform_indices = @transform_13, window_bounds = array<i64: 128, 128>}, {pipeline_mode = #tpu.pipeline_mode<synchronous>, transform_indices = @transform_14, window_bounds = array<i64: 1, 128>}, {transform_indices = @transform_15, window_bounds = array<i64: 16, 128>}]} {
    %c0 = arith.constant 0 : index
    %c0_0 = arith.constant 0 : index
    %0 = vector.load %arg1[%c0, %c0_0] : memref<16x128xbf16, #tpu.memory_space<vmem>>, vector<16x128xbf16>
    %c0_1 = arith.constant 0 : index
    %c0_2 = arith.constant 0 : index
    %1 = vector.load %arg2[%c0_1, %c0_2] : memref<128x128xbf16, #tpu.memory_space<vmem>>, vector<128x128xbf16>
    %cst = arith.constant dense<0.000000e+00> : vector<16x128xf32>
    %2 = tpu.matmul %0, %1, %cst {dimension_numbers = #tpu.dot_dimension_numbers<[1], [0], [0], [1], [0, 0, 1, 1], [], []>} : vector<16x128xbf16>, vector<128x128xbf16>, vector<16x128xf32> -> vector<16x128xf32>
    %c0_3 = arith.constant 0 : index
    %c0_4 = arith.constant 0 : index
    %3 = vector.load %arg3[%c0_3, %c0_4] : memref<1x128xf32, #tpu.memory_space<vmem>>, vector<1x128xf32>
    %4 = vector.broadcast %3 : vector<1x128xf32> to vector<16x128xf32>
    %5 = arith.addf %2, %4 : vector<16x128xf32>
    %cst_5 = arith.constant dense<0.000000e+00> : vector<16xf32>
    %6 = vector.multi_reduction <add>, %5, %cst_5 [1] : vector<16x128xf32> to vector<16xf32>
    %7 = vector.shape_cast %6 : vector<16xf32> to vector<16x1xf32>
    %8 = arith.mulf %5, %5 : vector<16x128xf32>
    %cst_6 = arith.constant dense<0.000000e+00> : vector<16xf32>
    %9 = vector.multi_reduction <add>, %8, %cst_6 [1] : vector<16x128xf32> to vector<16xf32>
    %10 = vector.shape_cast %9 : vector<16xf32> to vector<16x1xf32>
    %cst_7 = arith.constant 3.125000e-02 : f32
    %11 = vector.broadcast %cst_7 : f32 to vector<16x1xf32>
    %12 = arith.mulf %7, %11 : vector<16x1xf32>
    %cst_8 = arith.constant 3.125000e-02 : f32
    %13 = vector.broadcast %cst_8 : f32 to vector<16x1xf32>
    %14 = arith.mulf %10, %13 : vector<16x1xf32>
    %15 = arith.mulf %12, %12 : vector<16x1xf32>
    %16 = arith.subf %14, %15 : vector<16x1xf32>
    %cst_9 = arith.constant 0.000000e+00 : f32
    %17 = vector.broadcast %cst_9 : f32 to vector<16x1xf32>
    %18 = arith.maximumf %16, %17 : vector<16x1xf32>
    %c0_10 = arith.constant 0 : index
    %c0_11 = arith.constant 0 : index
    %19 = vector.load %arg4[%c0_10, %c0_11] : memref<1x128xf32, #tpu.memory_space<vmem>>, vector<1x128xf32>
    %cst_12 = arith.constant 9.99999974E-6 : f32
    %20 = vector.broadcast %cst_12 : f32 to vector<16x1xf32>
    %21 = arith.addf %18, %20 : vector<16x1xf32>
    %22 = math.rsqrt %21 : vector<16x1xf32>
    %23 = vector.broadcast %19 : vector<1x128xf32> to vector<16x128xf32>
    %24 = vector.broadcast %22 : vector<16x1xf32> to vector<16x128xf32>
    %25 = arith.mulf %23, %24 : vector<16x128xf32>
    %26 = vector.broadcast %12 : vector<16x1xf32> to vector<16x128xf32>
    %27 = arith.subf %5, %26 : vector<16x128xf32>
    %28 = arith.mulf %27, %25 : vector<16x128xf32>
    %c0_13 = arith.constant 0 : index
    %c0_14 = arith.constant 0 : index
    %29 = vector.load %arg5[%c0_13, %c0_14] : memref<1x128xf32, #tpu.memory_space<vmem>>, vector<1x128xf32>
    %30 = vector.broadcast %29 : vector<1x128xf32> to vector<16x128xf32>
    %31 = arith.addf %28, %30 : vector<16x128xf32>
    %cst_15 = arith.constant 0.00999999977 : f32
    %32 = vector.broadcast %cst_15 : f32 to vector<16x128xf32>
    %33 = arith.mulf %32, %31 : vector<16x128xf32>
    %34 = arith.maximumf %31, %33 : vector<16x128xf32>
    %35 = arith.truncf %34 : vector<16x128xf32> to vector<16x128xbf16>
    %c0_16 = arith.constant 0 : index
    %c0_17 = arith.constant 0 : index
    %36 = vector.load %arg6[%c0_16, %c0_17] : memref<128x128xbf16, #tpu.memory_space<vmem>>, vector<128x128xbf16>
    %cst_18 = arith.constant dense<0.000000e+00> : vector<16x128xf32>
    %37 = tpu.matmul %35, %36, %cst_18 {dimension_numbers = #tpu.dot_dimension_numbers<[1], [0], [0], [1], [0, 0, 1, 1], [], []>} : vector<16x128xbf16>, vector<128x128xbf16>, vector<16x128xf32> -> vector<16x128xf32>
    %c0_19 = arith.constant 0 : index
    %c0_20 = arith.constant 0 : index
    %38 = vector.load %arg7[%c0_19, %c0_20] : memref<1x128xf32, #tpu.memory_space<vmem>>, vector<1x128xf32>
    %39 = vector.broadcast %38 : vector<1x128xf32> to vector<16x128xf32>
    %40 = arith.addf %37, %39 : vector<16x128xf32>
    %cst_21 = arith.constant dense<0.000000e+00> : vector<16xf32>
    %41 = vector.multi_reduction <add>, %40, %cst_21 [1] : vector<16x128xf32> to vector<16xf32>
    %42 = vector.shape_cast %41 : vector<16xf32> to vector<16x1xf32>
    %43 = arith.mulf %40, %40 : vector<16x128xf32>
    %cst_22 = arith.constant dense<0.000000e+00> : vector<16xf32>
    %44 = vector.multi_reduction <add>, %43, %cst_22 [1] : vector<16x128xf32> to vector<16xf32>
    %45 = vector.shape_cast %44 : vector<16xf32> to vector<16x1xf32>
    %cst_23 = arith.constant 3.125000e-02 : f32
    %46 = vector.broadcast %cst_23 : f32 to vector<16x1xf32>
    %47 = arith.mulf %42, %46 : vector<16x1xf32>
    %cst_24 = arith.constant 3.125000e-02 : f32
    %48 = vector.broadcast %cst_24 : f32 to vector<16x1xf32>
    %49 = arith.mulf %45, %48 : vector<16x1xf32>
    %50 = arith.mulf %47, %47 : vector<16x1xf32>
    %51 = arith.subf %49, %50 : vector<16x1xf32>
    %cst_25 = arith.constant 0.000000e+00 : f32
    %52 = vector.broadcast %cst_25 : f32 to vector<16x1xf32>
    %53 = arith.maximumf %51, %52 : vector<16x1xf32>
    %c0_26 = arith.constant 0 : index
    %c0_27 = arith.constant 0 : index
    %54 = vector.load %arg8[%c0_26, %c0_27] : memref<1x128xf32, #tpu.memory_space<vmem>>, vector<1x128xf32>
    %cst_28 = arith.constant 9.99999974E-6 : f32
    %55 = vector.broadcast %cst_28 : f32 to vector<16x1xf32>
    %56 = arith.addf %53, %55 : vector<16x1xf32>
    %57 = math.rsqrt %56 : vector<16x1xf32>
    %58 = vector.broadcast %54 : vector<1x128xf32> to vector<16x128xf32>
    %59 = vector.broadcast %57 : vector<16x1xf32> to vector<16x128xf32>
    %60 = arith.mulf %58, %59 : vector<16x128xf32>
    %61 = vector.broadcast %47 : vector<16x1xf32> to vector<16x128xf32>
    %62 = arith.subf %40, %61 : vector<16x128xf32>
    %63 = arith.mulf %62, %60 : vector<16x128xf32>
    %c0_29 = arith.constant 0 : index
    %c0_30 = arith.constant 0 : index
    %64 = vector.load %arg9[%c0_29, %c0_30] : memref<1x128xf32, #tpu.memory_space<vmem>>, vector<1x128xf32>
    %65 = vector.broadcast %64 : vector<1x128xf32> to vector<16x128xf32>
    %66 = arith.addf %63, %65 : vector<16x128xf32>
    %cst_31 = arith.constant 0.00999999977 : f32
    %67 = vector.broadcast %cst_31 : f32 to vector<16x128xf32>
    %68 = arith.mulf %67, %66 : vector<16x128xf32>
    %69 = arith.maximumf %66, %68 : vector<16x128xf32>
    %70 = arith.truncf %69 : vector<16x128xf32> to vector<16x128xbf16>
    %c0_32 = arith.constant 0 : index
    %c0_33 = arith.constant 0 : index
    %71 = vector.load %arg10[%c0_32, %c0_33] : memref<128x128xbf16, #tpu.memory_space<vmem>>, vector<128x128xbf16>
    %cst_34 = arith.constant dense<0.000000e+00> : vector<16x128xf32>
    %72 = tpu.matmul %70, %71, %cst_34 {dimension_numbers = #tpu.dot_dimension_numbers<[1], [0], [0], [1], [0, 0, 1, 1], [], []>} : vector<16x128xbf16>, vector<128x128xbf16>, vector<16x128xf32> -> vector<16x128xf32>
    %c0_35 = arith.constant 0 : index
    %c0_36 = arith.constant 0 : index
    %73 = vector.load %arg11[%c0_35, %c0_36] : memref<1x128xf32, #tpu.memory_space<vmem>>, vector<1x128xf32>
    %74 = vector.broadcast %73 : vector<1x128xf32> to vector<16x128xf32>
    %75 = arith.addf %72, %74 : vector<16x128xf32>
    %cst_37 = arith.constant dense<0.000000e+00> : vector<16xf32>
    %76 = vector.multi_reduction <add>, %75, %cst_37 [1] : vector<16x128xf32> to vector<16xf32>
    %77 = vector.shape_cast %76 : vector<16xf32> to vector<16x1xf32>
    %78 = arith.mulf %75, %75 : vector<16x128xf32>
    %cst_38 = arith.constant dense<0.000000e+00> : vector<16xf32>
    %79 = vector.multi_reduction <add>, %78, %cst_38 [1] : vector<16x128xf32> to vector<16xf32>
    %80 = vector.shape_cast %79 : vector<16xf32> to vector<16x1xf32>
    %cst_39 = arith.constant 3.125000e-02 : f32
    %81 = vector.broadcast %cst_39 : f32 to vector<16x1xf32>
    %82 = arith.mulf %77, %81 : vector<16x1xf32>
    %cst_40 = arith.constant 3.125000e-02 : f32
    %83 = vector.broadcast %cst_40 : f32 to vector<16x1xf32>
    %84 = arith.mulf %80, %83 : vector<16x1xf32>
    %85 = arith.mulf %82, %82 : vector<16x1xf32>
    %86 = arith.subf %84, %85 : vector<16x1xf32>
    %cst_41 = arith.constant 0.000000e+00 : f32
    %87 = vector.broadcast %cst_41 : f32 to vector<16x1xf32>
    %88 = arith.maximumf %86, %87 : vector<16x1xf32>
    %c0_42 = arith.constant 0 : index
    %c0_43 = arith.constant 0 : index
    %89 = vector.load %arg12[%c0_42, %c0_43] : memref<1x128xf32, #tpu.memory_space<vmem>>, vector<1x128xf32>
    %cst_44 = arith.constant 9.99999974E-6 : f32
    %90 = vector.broadcast %cst_44 : f32 to vector<16x1xf32>
    %91 = arith.addf %88, %90 : vector<16x1xf32>
    %92 = math.rsqrt %91 : vector<16x1xf32>
    %93 = vector.broadcast %89 : vector<1x128xf32> to vector<16x128xf32>
    %94 = vector.broadcast %92 : vector<16x1xf32> to vector<16x128xf32>
    %95 = arith.mulf %93, %94 : vector<16x128xf32>
    %96 = vector.broadcast %82 : vector<16x1xf32> to vector<16x128xf32>
    %97 = arith.subf %75, %96 : vector<16x128xf32>
    %98 = arith.mulf %97, %95 : vector<16x128xf32>
    %c0_45 = arith.constant 0 : index
    %c0_46 = arith.constant 0 : index
    %99 = vector.load %arg13[%c0_45, %c0_46] : memref<1x128xf32, #tpu.memory_space<vmem>>, vector<1x128xf32>
    %100 = vector.broadcast %99 : vector<1x128xf32> to vector<16x128xf32>
    %101 = arith.addf %98, %100 : vector<16x128xf32>
    %cst_47 = arith.constant 0.00999999977 : f32
    %102 = vector.broadcast %cst_47 : f32 to vector<16x128xf32>
    %103 = arith.mulf %102, %101 : vector<16x128xf32>
    %104 = arith.maximumf %101, %103 : vector<16x128xf32>
    %105 = arith.truncf %104 : vector<16x128xf32> to vector<16x128xbf16>
    %c0_48 = arith.constant 0 : index
    %c0_49 = arith.constant 0 : index
    %106 = vector.load %arg14[%c0_48, %c0_49] : memref<128x128xbf16, #tpu.memory_space<vmem>>, vector<128x128xbf16>
    %cst_50 = arith.constant dense<0.000000e+00> : vector<16x128xf32>
    %107 = tpu.matmul %105, %106, %cst_50 {dimension_numbers = #tpu.dot_dimension_numbers<[1], [0], [0], [1], [0, 0, 1, 1], [], []>} : vector<16x128xbf16>, vector<128x128xbf16>, vector<16x128xf32> -> vector<16x128xf32>
    %c0_51 = arith.constant 0 : index
    %c0_52 = arith.constant 0 : index
    %108 = vector.load %arg15[%c0_51, %c0_52] : memref<1x128xf32, #tpu.memory_space<vmem>>, vector<1x128xf32>
    %109 = vector.broadcast %108 : vector<1x128xf32> to vector<16x128xf32>
    %110 = arith.addf %107, %109 : vector<16x128xf32>
    %c0_53 = arith.constant 0 : index
    %c0_54 = arith.constant 0 : index
    %111 = vector.load %arg16[%c0_53, %c0_54] : memref<16x128xf32, #tpu.memory_space<vmem>>, vector<16x128xf32>
    tpu.vector_store %arg16[%c0_53, %c0_54], %110 {strides = array<i32>} : memref<16x128xf32, #tpu.memory_space<vmem>>, vector<16x128xf32>,
    return
  }
  func.func @transform_0(%arg0: i32) -> (i32, i32) {
    %c0_i32 = arith.constant 0 : i32
    %c0_i32_0 = arith.constant 0 : i32
    return %arg0, %c0_i32 : i32, i32
  }
  func.func @transform_1(%arg0: i32) -> (i32, i32) {
    %c0_i32 = arith.constant 0 : i32
    %c0_i32_0 = arith.constant 0 : i32
    %c0_i32_1 = arith.constant 0 : i32
    return %c0_i32, %c0_i32_0 : i32, i32
  }
  func.func @transform_2(%arg0: i32) -> (i32, i32) {
    %c0_i32 = arith.constant 0 : i32
    %c0_i32_0 = arith.constant 0 : i32
    %c0_i32_1 = arith.constant 0 : i32
    return %c0_i32, %c0_i32_0 : i32, i32
  }
  func.func @transform_3(%arg0: i32) -> (i32, i32) {
    %c0_i32 = arith.constant 0 : i32
    %c0_i32_0 = arith.constant 0 : i32
    %c0_i32_1 = arith.constant 0 : i32
    return %c0_i32, %c0_i32_0 : i32, i32
  }
  func.func @transform_4(%arg0: i32) -> (i32, i32) {
    %c0_i32 = arith.constant 0 : i32
    %c0_i32_0 = arith.constant 0 : i32
    %c0_i32_1 = arith.constant 0 : i32
    return %c0_i32, %c0_i32_0 : i32, i32
  }
  func.func @transform_5(%arg0: i32) -> (i32, i32) {
    %c0_i32 = arith.constant 0 : i32
    %c0_i32_0 = arith.constant 0 : i32
    %c0_i32_1 = arith.constant 0 : i32
    return %c0_i32, %c0_i32_0 : i32, i32
  }
  func.func @transform_6(%arg0: i32) -> (i32, i32) {
    %c0_i32 = arith.constant 0 : i32
    %c0_i32_0 = arith.constant 0 : i32
    %c0_i32_1 = arith.constant 0 : i32
    return %c0_i32, %c0_i32_0 : i32, i32
  }
  func.func @transform_7(%arg0: i32) -> (i32, i32) {
    %c0_i32 = arith.constant 0 : i32
    %c0_i32_0 = arith.constant 0 : i32
    %c0_i32_1 = arith.constant 0 : i32
    return %c0_i32, %c0_i32_0 : i32, i32
  }
  func.func @transform_8(%arg0: i32) -> (i32, i32) {
    %c0_i32 = arith.constant 0 : i32
    %c0_i32_0 = arith.constant 0 : i32
    %c0_i32_1 = arith.constant 0 : i32
    return %c0_i32, %c0_i32_0 : i32, i32
  }
  func.func @transform_9(%arg0: i32) -> (i32, i32) {
    %c0_i32 = arith.constant 0 : i32
    %c0_i32_0 = arith.constant 0 : i32
    %c0_i32_1 = arith.constant 0 : i32
    return %c0_i32, %c0_i32_0 : i32, i32
  }
  func.func @transform_10(%arg0: i32) -> (i32, i32) {
    %c0_i32 = arith.constant 0 : i32
    %c0_i32_0 = arith.constant 0 : i32
    %c0_i32_1 = arith.constant 0 : i32
    return %c0_i32, %c0_i32_0 : i32, i32
  }
  func.func @transform_11(%arg0: i32) -> (i32, i32) {
    %c0_i32 = arith.constant 0 : i32
    %c0_i32_0 = arith.constant 0 : i32
    %c0_i32_1 = arith.constant 0 : i32
    return %c0_i32, %c0_i32_0 : i32, i32
  }
  func.func @transform_12(%arg0: i32) -> (i32, i32) {
    %c0_i32 = arith.constant 0 : i32
    %c0_i32_0 = arith.constant 0 : i32
    %c0_i32_1 = arith.constant 0 : i32
    return %c0_i32, %c0_i32_0 : i32, i32
  }
  func.func @transform_13(%arg0: i32) -> (i32, i32) {
    %c0_i32 = arith.constant 0 : i32
    %c0_i32_0 = arith.constant 0 : i32
    %c0_i32_1 = arith.constant 0 : i32
    return %c0_i32, %c0_i32_0 : i32, i32
  }
  func.func @transform_14(%arg0: i32) -> (i32, i32) {
    %c0_i32 = arith.constant 0 : i32
    %c0_i32_0 = arith.constant 0 : i32
    %c0_i32_1 = arith.constant 0 : i32
    return %c0_i32, %c0_i32_0 : i32, i32
  }
  func.func @transform_15(%arg0: i32) -> (i32, i32) {
    %c0_i32 = arith.constant 0 : i32
    %c0_i32_0 = arith.constant 0 : i32
    return %arg0, %c0_i32 : i32, i32
  }
}

</mosaic_0001>

<llo_original>
// kernel: _forward_jit.1
$region0: #{_forward_jit.1}
  #allocation0 [shape = 'u32[]', space=smem, size = 0x4, offset = 0x4, fixed_abs, tag = 'smem constant byte address 0x4 - core index']
  #allocation1 [shape = 'u32[144,128]{1,0:T(1,128)}', space=vmem, size = 0x12000, scoped, tag = 'internal scratch']
  %s0 = inlined_call_operand.vmem [shape: bf16[16,128], index: 0, kind: input, shape index: {}]
  %s1 = inlined_call_operand.vmem [shape: bf16[128,128], index: 1, kind: input, shape index: {}]
  %s2 = inlined_call_operand.vmem [shape: f32[1,128], index: 2, kind: input, shape index: {}]
  %s3 = inlined_call_operand.vmem [shape: f32[1,128], index: 3, kind: input, shape index: {}]
  %s4 = inlined_call_operand.vmem [shape: f32[1,128], index: 4, kind: input, shape index: {}]
  %s5 = inlined_call_operand.hbm [shape: bf16[128,128], index: 5, kind: input, shape index: {}]
  %s6 = inlined_call_operand.vmem [shape: f32[1,128], index: 6, kind: input, shape index: {}]
  %s7 = inlined_call_operand.vmem [shape: f32[1,128], index: 7, kind: input, shape index: {}]
  %s8 = inlined_call_operand.vmem [shape: f32[1,128], index: 8, kind: input, shape index: {}]
  %s9 = inlined_call_operand.hbm [shape: bf16[128,128], index: 9, kind: input, shape index: {}]
  %s10 = inlined_call_operand.vmem [shape: f32[1,128], index: 10, kind: input, shape index: {}]
  %s11 = inlined_call_operand.vmem [shape: f32[1,128], index: 11, kind: input, shape index: {}]
  %s12 = inlined_call_operand.vmem [shape: f32[1,128], index: 12, kind: input, shape index: {}]
  %s13 = inlined_call_operand.hbm [shape: bf16[128,128], index: 13, kind: input, shape index: {}]
  %s14 = inlined_call_operand.vmem [shape: f32[1,128], index: 14, kind: input, shape index: {}]
  %s15 = inlined_call_operand.vmem [shape: f32[16,128], index: 15, kind: output, shape index: {}]
  %s16 = sld [smem:[#allocation0]]
  $region82: #{_forward_jit.1} parent=0
    _
  %s18 = ssub.s32 1, %s16
  %s19 = scalar_select 0, %s18, %s16
  $region1: #{_forward_jit.1} parent=0
    #allocation2 [shape = 'u8[32768]{0}', space=vmem, size = 0x8000, scoped, tag = 'input window, operand 5, single buffered']
    #allocation3 [shape = 's32[1]{0}', space=sflag, size = 0x4, scoped, tag = 'scoped memory for _forward_jit.1']
    #allocation4 [shape = 'u8[32768]{0}', space=vmem, size = 0x8000, scoped, tag = 'input window, operand 9, single buffered']
    #allocation5 [shape = 's32[1]{0}', space=sflag, size = 0x4, scoped, tag = 'scoped memory for _forward_jit.1']
    #allocation6 [shape = 'u8[32768]{0}', space=vmem, size = 0x8000, scoped, tag = 'input window, operand 13, single buffered']
    %20 = vsyncpa [#allocation3], 0
    %21 = vsyncpa [#allocation5], 0
    // Predicated region
    $region2: #{_forward_jit.1} parent=1 // pred_check
      _
    $region3: #{_forward_jit.1} parent=1 // pred_check_branch
      %23 = sbr.rel (0) target = $region5
    $region4: #{_forward_jit.1} parent=1 // pred_region
      _
    $region5: #{_forward_jit.1} parent=1 // pred_fallthru
      _
    // Predicated region
    $region6: #{_forward_jit.1} parent=1 // pred_check
      _
    $region7: #{_forward_jit.1} parent=1 // pred_check_branch
      %25 = sbr.rel (0) target = $region9
    $region8: #{_forward_jit.1} parent=1 // pred_region
      _
    $region9: #{_forward_jit.1} parent=1 // pred_fallthru
      _
    // Predicated region
    $region10: #{_forward_jit.1} parent=1 // pred_check
      _
    $region11: #{_forward_jit.1} parent=1 // pred_check_branch
      %27 = sbr.rel (0) target = $region13
    $region12: #{_forward_jit.1} parent=1 // pred_region
      _
    $region13: #{_forward_jit.1} parent=1 // pred_fallthru
      _
    // Predicated region
    $region14: #{_forward_jit.1} parent=1 // pred_check
      _
    $region15: #{_forward_jit.1} parent=1 // pred_check_branch
      %29 = sbr.rel (0) target = $region17
    $region16: #{_forward_jit.1} parent=1 // pred_region
      _
    $region17: #{_forward_jit.1} parent=1 // pred_fallthru
      _
    // Predicated region
    $region18: #{_forward_jit.1} parent=1 // pred_check
      _
    $region19: #{_forward_jit.1} parent=1 // pred_check_branch
      %31 = sbr.rel (0) target = $region21
    $region20: #{_forward_jit.1} parent=1 // pred_region
      _
    $region21: #{_forward_jit.1} parent=1 // pred_fallthru
      _
    // Predicated region
    $region22: #{_forward_jit.1} parent=1 // pred_check
      _
    $region23: #{_forward_jit.1} parent=1 // pred_check_branch
      %33 = sbr.rel (0) target = $region25
    $region24: #{_forward_jit.1} parent=1 // pred_region
      %s35 = ssub.s32 1024, 1024
      %36 = vsyncadd [#allocation3], %s35
      %s37 = sshll.u32 [#allocation2], 4
      %s38 = int_to_ptr.vmem [resolvable:$true] %s37
      %43 = dma.hbm_to_vmem [thread:$0]  %s5, 1024, %s38, [#allocation3], 64, 64, 4
    $region25: #{_forward_jit.1} parent=1 // pred_fallthru
      _
    // Predicated region
    $region26: #{_forward_jit.1} parent=1 // pred_check
      _
    $region27: #{_forward_jit.1} parent=1 // pred_check_branch
      %45 = sbr.rel (0) target = $region29
    $region28: #{_forward_jit.1} parent=1 // pred_region
      _
    $region29: #{_forward_jit.1} parent=1 // pred_fallthru
      _
    // Predicated region
    $region30: #{_forward_jit.1} parent=1 // pred_check
      _
    $region31: #{_forward_jit.1} parent=1 // pred_check_branch
      %47 = sbr.rel (0) target = $region33
    $region32: #{_forward_jit.1} parent=1 // pred_region
      _
    $region33: #{_forward_jit.1} parent=1 // pred_fallthru
      _
    // Predicated region
    $region34: #{_forward_jit.1} parent=1 // pred_check
      _
    $region35: #{_forward_jit.1} parent=1 // pred_check_branch
      %49 = sbr.rel (0) target = $region37
    $region36: #{_forward_jit.1} parent=1 // pred_region
      _
    $region37: #{_forward_jit.1} parent=1 // pred_fallthru
      _
    // Predicated region
    $region38: #{_forward_jit.1} parent=1 // pred_check
      _
    $region39: #{_forward_jit.1} parent=1 // pred_check_branch
      %51 = sbr.rel (0) target = $region41
    $region40: #{_forward_jit.1} parent=1 // pred_region
      %s53 = ssub.s32 1024, 1024
      %54 = vsyncadd [#allocation5], %s53
      %s55 = sshll.u32 [#allocation4], 4
      %s56 = int_to_ptr.vmem [resolvable:$true] %s55
      %61 = dma.hbm_to_vmem [thread:$0]  %s9, 1024, %s56, [#allocation5], 64, 64, 4
    $region41: #{_forward_jit.1} parent=1 // pred_fallthru
      _
    // Predicated region
    $region42: #{_forward_jit.1} parent=1 // pred_check
      _
    $region43: #{_forward_jit.1} parent=1 // pred_check_branch
      %63 = sbr.rel (0) target = $region45
    $region44: #{_forward_jit.1} parent=1 // pred_region
      _
    $region45: #{_forward_jit.1} parent=1 // pred_fallthru
      _
    // Predicated region
    $region46: #{_forward_jit.1} parent=1 // pred_check
      _
    $region47: #{_forward_jit.1} parent=1 // pred_check_branch
      %65 = sbr.rel (0) target = $region49
    $region48: #{_forward_jit.1} parent=1 // pred_region
      _
    $region49: #{_forward_jit.1} parent=1 // pred_fallthru
      _
    // Predicated region
    $region50: #{_forward_jit.1} parent=1 // pred_check
      _
    $region51: #{_forward_jit.1} parent=1 // pred_check_branch
      %67 = sbr.rel (0) target = $region53
    $region52: #{_forward_jit.1} parent=1 // pred_region
      _
    $region53: #{_forward_jit.1} parent=1 // pred_fallthru
      _
    // Predicated region
    $region54: #{_forward_jit.1} parent=1 // pred_check
      _
    $region55: #{_forward_jit.1} parent=1 // pred_check_branch
      %69 = sbr.rel (0) target = $region57
    $region56: #{_forward_jit.1} parent=1 // pred_region
      %s71 = ssub.s32 1024, 1024
      %72 = vsyncadd [#allocation5], %s71
      %s73 = sshll.u32 [#allocation6], 4
      %s74 = int_to_ptr.vmem [resolvable:$true] %s73
      %79 = dma.hbm_to_vmem [thread:$0]  %s13, 1024, %s74, [#allocation5], 64, 64, 4
    $region57: #{_forward_jit.1} parent=1 // pred_fallthru
      _
    // Predicated region
    $region58: #{_forward_jit.1} parent=1 // pred_check
      _
    $region59: #{_forward_jit.1} parent=1 // pred_check_branch
      %81 = sbr.rel (0) target = $region61
    $region60: #{_forward_jit.1} parent=1 // pred_region
      _
    $region61: #{_forward_jit.1} parent=1 // pred_fallthru
      _
    // Predicated region
    $region62: #{_forward_jit.1} parent=1 // pred_check
      _
    $region63: #{_forward_jit.1} parent=1 // pred_check_branch
      %83 = sbr.rel (0) target = $region65
    $region64: #{_forward_jit.1} parent=1 // pred_region
      %84 = dma.done [#allocation3], 1024
    $region65: #{_forward_jit.1} parent=1 // pred_fallthru
      _
    // Predicated region
    $region66: #{_forward_jit.1} parent=1 // pred_check
      _
    $region67: #{_forward_jit.1} parent=1 // pred_check_branch
      %86 = sbr.rel (0) target = $region69
    $region68: #{_forward_jit.1} parent=1 // pred_region
      %87 = dma.done [#allocation5], 1024
    $region69: #{_forward_jit.1} parent=1 // pred_fallthru
      _
    // Predicated region
    $region70: #{_forward_jit.1} parent=1 // pred_check
      _
    $region71: #{_forward_jit.1} parent=1 // pred_check_branch
      %89 = sbr.rel (0) target = $region73
    $region72: #{_forward_jit.1} parent=1 // pred_region
      %90 = dma.done [#allocation5], 1024
    $region73: #{_forward_jit.1} parent=1 // pred_fallthru
      _
    %v92 = vld [vmem:[%s0] sm:$0xf]
    %v93 = vld [vmem:[%s0 + $0x4] sm:$0xf]
    %v94 = vld [vmem:[%s1] sm:$0xf]
    %v95 = vld [vmem:[%s1 + $0x4] sm:$0xf]
    %v96 = vld [vmem:[%s1 + $0x8] sm:$0xf]
    %v97 = vld [vmem:[%s1 + $0xc] sm:$0xf]
    %v98 = vld [vmem:[%s1 + $0x10] sm:$0xf]
    %v99 = vld [vmem:[%s1 + $0x14] sm:$0xf]
    %v100 = vld [vmem:[%s1 + $0x18] sm:$0xf]
    %v101 = vld [vmem:[%s1 + $0x1c] sm:$0xf]
    %v102 = vld [vmem:[%s1 + $0x20] sm:$0xf]
    %v103 = vld [vmem:[%s1 + $0x24] sm:$0xf]
    %v104 = vld [vmem:[%s1 + $0x28] sm:$0xf]
    %v105 = vld [vmem:[%s1 + $0x2c] sm:$0xf]
    %v106 = vld [vmem:[%s1 + $0x30] sm:$0xf]
    %v107 = vld [vmem:[%s1 + $0x34] sm:$0xf]
    %v108 = vld [vmem:[%s1 + $0x38] sm:$0xf]
    %v109 = vld [vmem:[%s1 + $0x3c] sm:$0xf]
    %v110 = vld [vmem:[%s2] sm:$0x1]
    %v112 = vlaneseq
    %v113 = vshrl.u32 %v112, 7
    %v114 = vsub.s32 0, %v113
    %v115 = vrot.slane %v110, %v114
    %v119 = vunpack.c.l.b16 %v92
    %v120 = vunpack.c.l.b16 %v93
    %v121 = vpack.c.b16 %v120, %v119
    %v139 = vunpack.c.l.b16 %v94
    %v140 = vunpack.c.l.b16 %v95
    %v141 = vunpack.c.l.b16 %v96
    %v142 = vunpack.c.l.b16 %v97
    %v143 = vunpack.c.l.b16 %v98
    %v144 = vunpack.c.l.b16 %v99
    %v145 = vunpack.c.l.b16 %v100
    %v146 = vunpack.c.l.b16 %v101
    %v147 = vunpack.c.l.b16 %v102
    %v148 = vunpack.c.l.b16 %v103
    %v149 = vunpack.c.l.b16 %v104
    %v150 = vunpack.c.l.b16 %v105
    %v151 = vunpack.c.l.b16 %v106
    %v152 = vunpack.c.l.b16 %v107
    %v153 = vunpack.c.l.b16 %v108
    %v154 = vunpack.c.l.b16 %v109
    %v155 = vpack.c.b16 %v140, %v139
    %v156 = vpack.c.b16 %v142, %v141
    %v157 = vpack.c.b16 %v144, %v143
    %v158 = vpack.c.b16 %v146, %v145
    %v159 = vpack.c.b16 %v148, %v147
    %v160 = vpack.c.b16 %v150, %v149
    %v161 = vpack.c.b16 %v152, %v151
    %v162 = vpack.c.b16 %v154, %v153
    %171 = vmatprep.subr.bf16.mxu0 0
    %172 = vmatpush1.bf16.msra.mxu0 %v155
    %173 = vmatprep.subr.bf16.mxu0 0
    %174 = vmatpush1.bf16.msra.mxu0 %v156
    %175 = vmatprep.subr.bf16.mxu0 0
    %176 = vmatpush1.bf16.msra.mxu0 %v157
    %177 = vmatprep.subr.bf16.mxu0 0
    %178 = vmatpush1.bf16.msra.mxu0 %v158
    %179 = vmatprep.subr.bf16.mxu0 0
    %180 = vmatpush1.bf16.msra.mxu0 %v159
    %181 = vmatprep.subr.bf16.mxu0 0
    %182 = vmatpush1.bf16.msra.mxu0 %v160
    %183 = vmatprep.subr.bf16.mxu0 0
    %184 = vmatpush1.bf16.msra.mxu0 %v161
    %185 = vmatprep.subr.bf16.mxu0 0
    %186 = vmatpush1.bf16.msra.mxu0 %v162
    %187 = vmatprep.subr.bf16.mxu0 0
    %188 = vmatpush1.bf16.msra.mxu0 0
    %189 = vmatprep.subr.bf16.mxu0 0
    %190 = vmatpush1.bf16.msra.mxu0 0
    %191 = vmatprep.subr.bf16.mxu0 0
    %192 = vmatpush1.bf16.msra.mxu0 0
    %193 = vmatprep.subr.bf16.mxu0 0
    %194 = vmatpush1.bf16.msra.mxu0 0
    %195 = vmatprep.subr.bf16.mxu0 0
    %196 = vmatpush1.bf16.msra.mxu0 0
    %197 = vmatprep.subr.bf16.mxu0 0
    %198 = vmatpush1.bf16.msra.mxu0 0
    %199 = vmatprep.subr.bf16.mxu0 0
    %200 = vmatpush1.bf16.msra.mxu0 0
    %201 = vmatprep.subr.bf16.mxu0 0
    %202 = vmatpush1.bf16.msra.mxu0 0
    %203 = vmatprep.mubr.bf16.mxu0 0
    %204 = vmatmul.mubr.bf16.gmra.mrb[0].mxu0 %v121
    %v205 = vpop.f32.mrb[0].mxu0
    %v206 = vadd.f32 %v115, %v205
    %v207 = vpop.f32.mrb[0].mxu0
    %v208 = vpop.f32.mrb[0].mxu0
    %v209 = vadd.f32 %v115, %v208
    %v210 = vpop.f32.mrb[0].mxu0
    %211 = vdwg.mxu0
    %212 = vadd.xlane.f32.xlu0 %v206
    %v213 = vpop.xlane.xlu0 %212
    %214 = vadd.xlane.f32.xlu0 %v209
    %v215 = vpop.xlane.xlu0 %214
    %v216 = vmul.f32 %v206, %v206
    %v217 = vmul.f32 %v209, %v209
    %218 = vadd.xlane.f32.xlu0 %v216
    %v219 = vpop.xlane.xlu0 %218
    %220 = vadd.xlane.f32.xlu0 %v217
    %v221 = vpop.xlane.xlu0 %220
    %v222 = vmul.f32 %v213, 0.03125
    %v223 = vmul.f32 %v215, 0.03125
    %v224 = vmul.f32 %v219, 0.03125
    %v225 = vmul.f32 %v221, 0.03125
    %v226 = vmul.f32 %v222, %v222
    %v227 = vmul.f32 %v223, %v223
    %v228 = vsub.f32 %v224, %v226
    %v229 = vsub.f32 %v225, %v227
    %v230 = vmax.f32 %v228, 0.0
    %v231 = vmax.f32 %v229, 0.0
    %v232 = vld [vmem:[%s3] sm:$0x1]
    %v233 = vadd.f32 %v230, 1e-05
    %v234 = vadd.f32 %v231, 1e-05
    %v235 = vrsqrt.pop %v233
    %v236 = vrsqrt.pop %v234
    %v238 = vlaneseq
    %v239 = vshrl.u32 %v238, 7
    %v240 = vsub.s32 0, %v239
    %v241 = vrot.slane %v232, %v240
    %v243 = vmul.f32 %v241, %v235
    %v244 = vmul.f32 %v241, %v236
    %v245 = vsub.f32 %v206, %v222
    %v246 = vsub.f32 %v209, %v223
    %v247 = vmul.f32 %v245, %v243
    %v248 = vmul.f32 %v246, %v244
    %v249 = vld [vmem:[%s4] sm:$0x1]
    %v251 = vlaneseq
    %v252 = vshrl.u32 %v251, 7
    %v253 = vsub.s32 0, %v252
    %v254 = vrot.slane %v249, %v253
    %v256 = vadd.f32 %v247, %v254
    %v257 = vadd.f32 %v248, %v254
    %v258 = vmul.f32 %v256, 0.01
    %v259 = vmul.f32 %v257, 0.01
    %v260 = vmax.f32 %v256, %v258
    %v261 = vmax.f32 %v257, %v259
    %v262 = vpack.c.bf16 %v261, %v260
    %v263 = vld [vmem:[#allocation2] sm:$0xf]
    %v264 = vld [vmem:[#allocation2 + $0x4] sm:$0xf]
    %v265 = vld [vmem:[#allocation2 + $0x8] sm:$0xf]
    %v266 = vld [vmem:[#allocation2 + $0xc] sm:$0xf]
    %v267 = vld [vmem:[#allocation2 + $0x10] sm:$0xf]
    %v268 = vld [vmem:[#allocation2 + $0x14] sm:$0xf]
    %v269 = vld [vmem:[#allocation2 + $0x18] sm:$0xf]
    %v270 = vld [vmem:[#allocation2 + $0x1c] sm:$0xf]
    %v271 = vld [vmem:[#allocation2 + $0x20] sm:$0xf]
    %v272 = vld [vmem:[#allocation2 + $0x24] sm:$0xf]
    %v273 = vld [vmem:[#allocation2 + $0x28] sm:$0xf]
    %v274 = vld [vmem:[#allocation2 + $0x2c] sm:$0xf]
    %v275 = vld [vmem:[#allocation2 + $0x30] sm:$0xf]
    %v276 = vld [vmem:[#allocation2 + $0x34] sm:$0xf]
    %v277 = vld [vmem:[#allocation2 + $0x38] sm:$0xf]
    %v278 = vld [vmem:[#allocation2 + $0x3c] sm:$0xf]
    %v279 = vld [vmem:[%s6] sm:$0x1]
    %v281 = vlaneseq
    %v282 = vshrl.u32 %v281, 7
    %v283 = vsub.s32 0, %v282
    %v284 = vrot.slane %v279, %v283
    %v302 = vunpack.c.l.b16 %v263
    %v303 = vunpack.c.l.b16 %v264
    %v304 = vunpack.c.l.b16 %v265
    %v305 = vunpack.c.l.b16 %v266
    %v306 = vunpack.c.l.b16 %v267
    %v307 = vunpack.c.l.b16 %v268
    %v308 = vunpack.c.l.b16 %v269
    %v309 = vunpack.c.l.b16 %v270
    %v310 = vunpack.c.l.b16 %v271
    %v311 = vunpack.c.l.b16 %v272
    %v312 = vunpack.c.l.b16 %v273
    %v313 = vunpack.c.l.b16 %v274
    %v314 = vunpack.c.l.b16 %v275
    %v315 = vunpack.c.l.b16 %v276
    %v316 = vunpack.c.l.b16 %v277
    %v317 = vunpack.c.l.b16 %v278
    %v318 = vpack.c.b16 %v303, %v302
    %v319 = vpack.c.b16 %v305, %v304
    %v320 = vpack.c.b16 %v307, %v306
    %v321 = vpack.c.b16 %v309, %v308
    %v322 = vpack.c.b16 %v311, %v310
    %v323 = vpack.c.b16 %v313, %v312
    %v324 = vpack.c.b16 %v315, %v314
    %v325 = vpack.c.b16 %v317, %v316
    %334 = vmatprep.subr.bf16.mxu0 0
    %335 = vmatpush1.bf16.msra.mxu0 %v318
    %336 = vmatprep.subr.bf16.mxu0 0
    %337 = vmatpush1.bf16.msra.mxu0 %v319
    %338 = vmatprep.subr.bf16.mxu0 0
    %339 = vmatpush1.bf16.msra.mxu0 %v320
    %340 = vmatprep.subr.bf16.mxu0 0
    %341 = vmatpush1.bf16.msra.mxu0 %v321
    %342 = vmatprep.subr.bf16.mxu0 0
    %343 = vmatpush1.bf16.msra.mxu0 %v322
    %344 = vmatprep.subr.bf16.mxu0 0
    %345 = vmatpush1.bf16.msra.mxu0 %v323
    %346 = vmatprep.subr.bf16.mxu0 0
    %347 = vmatpush1.bf16.msra.mxu0 %v324
    %348 = vmatprep.subr.bf16.mxu0 0
    %349 = vmatpush1.bf16.msra.mxu0 %v325
    %350 = vmatprep.subr.bf16.mxu0 0
    %351 = vmatpush1.bf16.msra.mxu0 0
    %352 = vmatprep.subr.bf16.mxu0 0
    %353 = vmatpush1.bf16.msra.mxu0 0
    %354 = vmatprep.subr.bf16.mxu0 0
    %355 = vmatpush1.bf16.msra.mxu0 0
    %356 = vmatprep.subr.bf16.mxu0 0
    %357 = vmatpush1.bf16.msra.mxu0 0
    %358 = vmatprep.subr.bf16.mxu0 0
    %359 = vmatpush1.bf16.msra.mxu0 0
    %360 = vmatprep.subr.bf16.mxu0 0
    %361 = vmatpush1.bf16.msra.mxu0 0
    %362 = vmatprep.subr.bf16.mxu0 0
    %363 = vmatpush1.bf16.msra.mxu0 0
    %364 = vmatprep.subr.bf16.mxu0 0
    %365 = vmatpush1.bf16.msra.mxu0 0
    %366 = vmatprep.mubr.bf16.mxu0 0
    %367 = vmatmul.mubr.bf16.gmra.mrb[0].mxu0 %v262
    %v368 = vpop.f32.mrb[0].mxu0
    %v369 = vadd.f32 %v284, %v368
    %v370 = vpop.f32.mrb[0].mxu0
    %v371 = vpop.f32.mrb[0].mxu0
    %v372 = vadd.f32 %v284, %v371
    %v373 = vpop.f32.mrb[0].mxu0
    %374 = vdwg.mxu0
    %375 = vadd.xlane.f32.xlu0 %v369
    %v376 = vpop.xlane.xlu0 %375
    %377 = vadd.xlane.f32.xlu0 %v372
    %v378 = vpop.xlane.xlu0 %377
    %v379 = vmul.f32 %v369, %v369
    %v380 = vmul.f32 %v372, %v372
    %381 = vadd.xlane.f32.xlu0 %v379
    %v382 = vpop.xlane.xlu0 %381
    %383 = vadd.xlane.f32.xlu0 %v380
    %v384 = vpop.xlane.xlu0 %383
    %v385 = vmul.f32 %v376, 0.03125
    %v386 = vmul.f32 %v378, 0.03125
    %v387 = vmul.f32 %v382, 0.03125
    %v388 = vmul.f32 %v384, 0.03125
    %v389 = vmul.f32 %v385, %v385
    %v390 = vmul.f32 %v386, %v386
    %v391 = vsub.f32 %v387, %v389
    %v392 = vsub.f32 %v388, %v390
    %v393 = vmax.f32 %v391, 0.0
    %v394 = vmax.f32 %v392, 0.0
    %v395 = vld [vmem:[%s7] sm:$0x1]
    %v396 = vadd.f32 %v393, 1e-05
    %v397 = vadd.f32 %v394, 1e-05
    %v398 = vrsqrt.pop %v396
    %v399 = vrsqrt.pop %v397
    %v401 = vlaneseq
    %v402 = vshrl.u32 %v401, 7
    %v403 = vsub.s32 0, %v402
    %v404 = vrot.slane %v395, %v403
    %v406 = vmul.f32 %v404, %v398
    %v407 = vmul.f32 %v404, %v399
    %v408 = vsub.f32 %v369, %v385
    %v409 = vsub.f32 %v372, %v386
    %v410 = vmul.f32 %v408, %v406
    %v411 = vmul.f32 %v409, %v407
    %v412 = vld [vmem:[%s8] sm:$0x1]
    %v414 = vlaneseq
    %v415 = vshrl.u32 %v414, 7
    %v416 = vsub.s32 0, %v415
    %v417 = vrot.slane %v412, %v416
    %v419 = vadd.f32 %v410, %v417
    %v420 = vadd.f32 %v411, %v417
    %v421 = vmul.f32 %v419, 0.01
    %v422 = vmul.f32 %v420, 0.01
    %v423 = vmax.f32 %v419, %v421
    %v424 = vmax.f32 %v420, %v422
    %v425 = vpack.c.bf16 %v424, %v423
    %v426 = vld [vmem:[#allocation4] sm:$0xf]
    %v427 = vld [vmem:[#allocation4 + $0x4] sm:$0xf]
    %v428 = vld [vmem:[#allocation4 + $0x8] sm:$0xf]
    %v429 = vld [vmem:[#allocation4 + $0xc] sm:$0xf]
    %v430 = vld [vmem:[#allocation4 + $0x10] sm:$0xf]
    %v431 = vld [vmem:[#allocation4 + $0x14] sm:$0xf]
    %v432 = vld [vmem:[#allocation4 + $0x18] sm:$0xf]
    %v433 = vld [vmem:[#allocation4 + $0x1c] sm:$0xf]
    %v434 = vld [vmem:[#allocation4 + $0x20] sm:$0xf]
    %v435 = vld [vmem:[#allocation4 + $0x24] sm:$0xf]
    %v436 = vld [vmem:[#allocation4 + $0x28] sm:$0xf]
    %v437 = vld [vmem:[#allocation4 + $0x2c] sm:$0xf]
    %v438 = vld [vmem:[#allocation4 + $0x30] sm:$0xf]
    %v439 = vld [vmem:[#allocation4 + $0x34] sm:$0xf]
    %v440 = vld [vmem:[#allocation4 + $0x38] sm:$0xf]
    %v441 = vld [vmem:[#allocation4 + $0x3c] sm:$0xf]
    %v442 = vld [vmem:[%s10] sm:$0x1]
    %v444 = vlaneseq
    %v445 = vshrl.u32 %v444, 7
    %v446 = vsub.s32 0, %v445
    %v447 = vrot.slane %v442, %v446
    %v465 = vunpack.c.l.b16 %v426
    %v466 = vunpack.c.l.b16 %v427
    %v467 = vunpack.c.l.b16 %v428
    %v468 = vunpack.c.l.b16 %v429
    %v469 = vunpack.c.l.b16 %v430
    %v470 = vunpack.c.l.b16 %v431
    %v471 = vunpack.c.l.b16 %v432
    %v472 = vunpack.c.l.b16 %v433
    %v473 = vunpack.c.l.b16 %v434
    %v474 = vunpack.c.l.b16 %v435
    %v475 = vunpack.c.l.b16 %v436
    %v476 = vunpack.c.l.b16 %v437
    %v477 = vunpack.c.l.b16 %v438
    %v478 = vunpack.c.l.b16 %v439
    %v479 = vunpack.c.l.b16 %v440
    %v480 = vunpack.c.l.b16 %v441
    %v481 = vpack.c.b16 %v466, %v465
    %v482 = vpack.c.b16 %v468, %v467
    %v483 = vpack.c.b16 %v470, %v469
    %v484 = vpack.c.b16 %v472, %v471
    %v485 = vpack.c.b16 %v474, %v473
    %v486 = vpack.c.b16 %v476, %v475
    %v487 = vpack.c.b16 %v478, %v477
    %v488 = vpack.c.b16 %v480, %v479
    %497 = vmatprep.subr.bf16.mxu0 0
    %498 = vmatpush1.bf16.msra.mxu0 %v481
    %499 = vmatprep.subr.bf16.mxu0 0
    %500 = vmatpush1.bf16.msra.mxu0 %v482
    %501 = vmatprep.subr.bf16.mxu0 0
    %502 = vmatpush1.bf16.msra.mxu0 %v483
    %503 = vmatprep.subr.bf16.mxu0 0
    %504 = vmatpush1.bf16.msra.mxu0 %v484
    %505 = vmatprep.subr.bf16.mxu0 0
    %506 = vmatpush1.bf16.msra.mxu0 %v485
    %507 = vmatprep.subr.bf16.mxu0 0
    %508 = vmatpush1.bf16.msra.mxu0 %v486
    %509 = vmatprep.subr.bf16.mxu0 0
    %510 = vmatpush1.bf16.msra.mxu0 %v487
    %511 = vmatprep.subr.bf16.mxu0 0
    %512 = vmatpush1.bf16.msra.mxu0 %v488
    %513 = vmatprep.subr.bf16.mxu0 0
    %514 = vmatpush1.bf16.msra.mxu0 0
    %515 = vmatprep.subr.bf16.mxu0 0
    %516 = vmatpush1.bf16.msra.mxu0 0
    %517 = vmatprep.subr.bf16.mxu0 0
    %518 = vmatpush1.bf16.msra.mxu0 0
    %519 = vmatprep.subr.bf16.mxu0 0
    %520 = vmatpush1.bf16.msra.mxu0 0
    %521 = vmatprep.subr.bf16.mxu0 0
    %522 = vmatpush1.bf16.msra.mxu0 0
    %523 = vmatprep.subr.bf16.mxu0 0
    %524 = vmatpush1.bf16.msra.mxu0 0
    %525 = vmatprep.subr.bf16.mxu0 0
    %526 = vmatpush1.bf16.msra.mxu0 0
    %527 = vmatprep.subr.bf16.mxu0 0
    %528 = vmatpush1.bf16.msra.mxu0 0
    %529 = vmatprep.mubr.bf16.mxu0 0
    %530 = vmatmul.mubr.bf16.gmra.mrb[0].mxu0 %v425
    %v531 = vpop.f32.mrb[0].mxu0
    %v532 = vadd.f32 %v447, %v531
    %v533 = vpop.f32.mrb[0].mxu0
    %v534 = vpop.f32.mrb[0].mxu0
    %v535 = vadd.f32 %v447, %v534
    %v536 = vpop.f32.mrb[0].mxu0
    %537 = vdwg.mxu0
    %538 = vadd.xlane.f32.xlu0 %v532
    %v539 = vpop.xlane.xlu0 %538
    %540 = vadd.xlane.f32.xlu0 %v535
    %v541 = vpop.xlane.xlu0 %540
    %v542 = vmul.f32 %v532, %v532
    %v543 = vmul.f32 %v535, %v535
    %544 = vadd.xlane.f32.xlu0 %v542
    %v545 = vpop.xlane.xlu0 %544
    %546 = vadd.xlane.f32.xlu0 %v543
    %v547 = vpop.xlane.xlu0 %546
    %v548 = vmul.f32 %v539, 0.03125
    %v549 = vmul.f32 %v541, 0.03125
    %v550 = vmul.f32 %v545, 0.03125
    %v551 = vmul.f32 %v547, 0.03125
    %v552 = vmul.f32 %v548, %v548
    %v553 = vmul.f32 %v549, %v549
    %v554 = vsub.f32 %v550, %v552
    %v555 = vsub.f32 %v551, %v553
    %v556 = vmax.f32 %v554, 0.0
    %v557 = vmax.f32 %v555, 0.0
    %v558 = vld [vmem:[%s11] sm:$0x1]
    %v559 = vadd.f32 %v556, 1e-05
    %v560 = vadd.f32 %v557, 1e-05
    %v561 = vrsqrt.pop %v559
    %v562 = vrsqrt.pop %v560
    %v564 = vlaneseq
    %v565 = vshrl.u32 %v564, 7
    %v566 = vsub.s32 0, %v565
    %v567 = vrot.slane %v558, %v566
    %v569 = vmul.f32 %v567, %v561
    %v570 = vmul.f32 %v567, %v562
    %v571 = vsub.f32 %v532, %v548
    %v572 = vsub.f32 %v535, %v549
    %v573 = vmul.f32 %v571, %v569
    %v574 = vmul.f32 %v572, %v570
    %v575 = vld [vmem:[%s12] sm:$0x1]
    %v577 = vlaneseq
    %v578 = vshrl.u32 %v577, 7
    %v579 = vsub.s32 0, %v578
    %v580 = vrot.slane %v575, %v579
    %v582 = vadd.f32 %v573, %v580
    %v583 = vadd.f32 %v574, %v580
    %v584 = vmul.f32 %v582, 0.01
    %v585 = vmul.f32 %v583, 0.01
    %v586 = vmax.f32 %v582, %v584
    %v587 = vmax.f32 %v583, %v585
    %v588 = vpack.c.bf16 %v587, %v586
    %v589 = vld [vmem:[#allocation6] sm:$0xf]
    %v590 = vld [vmem:[#allocation6 + $0x4] sm:$0xf]
    %v591 = vld [vmem:[#allocation6 + $0x8] sm:$0xf]
    %v592 = vld [vmem:[#allocation6 + $0xc] sm:$0xf]
    %v593 = vld [vmem:[#allocation6 + $0x10] sm:$0xf]
    %v594 = vld [vmem:[#allocation6 + $0x14] sm:$0xf]
    %v595 = vld [vmem:[#allocation6 + $0x18] sm:$0xf]
    %v596 = vld [vmem:[#allocation6 + $0x1c] sm:$0xf]
    %v597 = vld [vmem:[#allocation6 + $0x20] sm:$0xf]
    %v598 = vld [vmem:[#allocation6 + $0x24] sm:$0xf]
    %v599 = vld [vmem:[#allocation6 + $0x28] sm:$0xf]
    %v600 = vld [vmem:[#allocation6 + $0x2c] sm:$0xf]
    %v601 = vld [vmem:[#allocation6 + $0x30] sm:$0xf]
    %v602 = vld [vmem:[#allocation6 + $0x34] sm:$0xf]
    %v603 = vld [vmem:[#allocation6 + $0x38] sm:$0xf]
    %v604 = vld [vmem:[#allocation6 + $0x3c] sm:$0xf]
    %v605 = vld [vmem:[%s14] sm:$0x1]
    %v607 = vlaneseq
    %v608 = vshrl.u32 %v607, 7
    %v609 = vsub.s32 0, %v608
    %v610 = vrot.slane %v605, %v609
    %v628 = vunpack.c.l.b16 %v589
    %v629 = vunpack.c.l.b16 %v590
    %v630 = vunpack.c.l.b16 %v591
    %v631 = vunpack.c.l.b16 %v592
    %v632 = vunpack.c.l.b16 %v593
    %v633 = vunpack.c.l.b16 %v594
    %v634 = vunpack.c.l.b16 %v595
    %v635 = vunpack.c.l.b16 %v596
    %v636 = vunpack.c.l.b16 %v597
    %v637 = vunpack.c.l.b16 %v598
    %v638 = vunpack.c.l.b16 %v599
    %v639 = vunpack.c.l.b16 %v600
    %v640 = vunpack.c.l.b16 %v601
    %v641 = vunpack.c.l.b16 %v602
    %v642 = vunpack.c.l.b16 %v603
    %v643 = vunpack.c.l.b16 %v604
    %v644 = vpack.c.b16 %v629, %v628
    %v645 = vpack.c.b16 %v631, %v630
    %v646 = vpack.c.b16 %v633, %v632
    %v647 = vpack.c.b16 %v635, %v634
    %v648 = vpack.c.b16 %v637, %v636
    %v649 = vpack.c.b16 %v639, %v638
    %v650 = vpack.c.b16 %v641, %v640
    %v651 = vpack.c.b16 %v643, %v642
    %660 = vmatprep.subr.bf16.mxu0 0
    %661 = vmatpush1.bf16.msra.mxu0 %v644
    %662 = vmatprep.subr.bf16.mxu0 0
    %663 = vmatpush1.bf16.msra.mxu0 %v645
    %664 = vmatprep.subr.bf16.mxu0 0
    %665 = vmatpush1.bf16.msra.mxu0 %v646
    %666 = vmatprep.subr.bf16.mxu0 0
    %667 = vmatpush1.bf16.msra.mxu0 %v647
    %668 = vmatprep.subr.bf16.mxu0 0
    %669 = vmatpush1.bf16.msra.mxu0 %v648
    %670 = vmatprep.subr.bf16.mxu0 0
    %671 = vmatpush1.bf16.msra.mxu0 %v649
    %672 = vmatprep.subr.bf16.mxu0 0
    %673 = vmatpush1.bf16.msra.mxu0 %v650
    %674 = vmatprep.subr.bf16.mxu0 0
    %675 = vmatpush1.bf16.msra.mxu0 %v651
    %676 = vmatprep.subr.bf16.mxu0 0
    %677 = vmatpush1.bf16.msra.mxu0 0
    %678 = vmatprep.subr.bf16.mxu0 0
    %679 = vmatpush1.bf16.msra.mxu0 0
    %680 = vmatprep.subr.bf16.mxu0 0
    %681 = vmatpush1.bf16.msra.mxu0 0
    %682 = vmatprep.subr.bf16.mxu0 0
    %683 = vmatpush1.bf16.msra.mxu0 0
    %684 = vmatprep.subr.bf16.mxu0 0
    %685 = vmatpush1.bf16.msra.mxu0 0
    %686 = vmatprep.subr.bf16.mxu0 0
    %687 = vmatpush1.bf16.msra.mxu0 0
    %688 = vmatprep.subr.bf16.mxu0 0
    %689 = vmatpush1.bf16.msra.mxu0 0
    %690 = vmatprep.subr.bf16.mxu0 0
    %691 = vmatpush1.bf16.msra.mxu0 0
    %692 = vmatprep.mubr.bf16.mxu0 0
    %693 = vmatmul.mubr.bf16.gmra.mrb[0].mxu0 %v588
    %v694 = vpop.f32.mrb[0].mxu0
    %v695 = vadd.f32 %v610, %v694
    %v696 = vpop.f32.mrb[0].mxu0
    %v697 = vpop.f32.mrb[0].mxu0
    %v698 = vadd.f32 %v610, %v697
    %v699 = vpop.f32.mrb[0].mxu0
    %700 = vdwg.mxu0
    %701 = vst [vmem:[%s15] sm:$0xff] %v695
    %702 = vst [vmem:[%s15 + $0x8] sm:$0xff] %v698
    // Predicated region
    $region74: #{_forward_jit.1} parent=1 // pred_check
      _
    $region75: #{_forward_jit.1} parent=1 // pred_check_branch
      %704 = sbr.rel (0) target = $region77
    $region76: #{_forward_jit.1} parent=1 // pred_region
      _
    $region77: #{_forward_jit.1} parent=1 // pred_fallthru
      _
    // Predicated region
    $region78: #{_forward_jit.1} parent=1 // pred_check
      _
    $region79: #{_forward_jit.1} parent=1 // pred_check_branch
      %706 = sbr.rel (0) target = $region81
    $region80: #{_forward_jit.1} parent=1 // pred_region
      _
    $region81: #{_forward_jit.1} parent=1 // pred_fallthru
      _
    %707 = vsyncpa [#allocation3], 1
    %708 = vsyncpa [#allocation5], 1

// kernel: _forward_jit.1
$region0: #{_forward_jit.1}
  #allocation0 [shape = 'u32[]', space=smem, size = 0x4, offset = 0x4, fixed_abs, tag = 'smem constant byte address 0x4 - core index']
  #allocation1 [shape = 'u32[144,128]{1,0:T(1,128)}', space=vmem, size = 0x12000, scoped, tag = 'internal scratch']
  %s0 = inlined_call_operand.vmem [shape: bf16[16,128], index: 0, kind: input, shape index: {}]
  %s1 = inlined_call_operand.vmem [shape: bf16[128,128], index: 1, kind: input, shape index: {}]
  %s2 = inlined_call_operand.vmem [shape: f32[1,128], index: 2, kind: input, shape index: {}]
  %s3 = inlined_call_operand.vmem [shape: f32[1,128], index: 3, kind: input, shape index: {}]
  %s4 = inlined_call_operand.vmem [shape: f32[1,128], index: 4, kind: input, shape index: {}]
  %s5 = inlined_call_operand.hbm [shape: bf16[128,128], index: 5, kind: input, shape index: {}]
  %s6 = inlined_call_operand.vmem [shape: f32[1,128], index: 6, kind: input, shape index: {}]
  %s7 = inlined_call_operand.vmem [shape: f32[1,128], index: 7, kind: input, shape index: {}]
  %s8 = inlined_call_operand.vmem [shape: f32[1,128], index: 8, kind: input, shape index: {}]
  %s9 = inlined_call_operand.hbm [shape: bf16[128,128], index: 9, kind: input, shape index: {}]
  %s10 = inlined_call_operand.vmem [shape: f32[1,128], index: 10, kind: input, shape index: {}]
  %s11 = inlined_call_operand.vmem [shape: f32[1,128], index: 11, kind: input, shape index: {}]
  %s12 = inlined_call_operand.vmem [shape: f32[1,128], index: 12, kind: input, shape index: {}]
  %s13 = inlined_call_operand.hbm [shape: bf16[128,128], index: 13, kind: input, shape index: {}]
  %s14 = inlined_call_operand.vmem [shape: f32[1,128], index: 14, kind: input, shape index: {}]
  %s15 = inlined_call_operand.vmem [shape: f32[16,128], index: 15, kind: output, shape index: {}]
  %s16 = sld [smem:[#allocation0]]
  $region82: #{_forward_jit.1} parent=0
    _
  %s18 = ssub.s32 1, %s16
  %s19 = scalar_select 0, %s18, %s16
  $region1: #{_forward_jit.1} parent=0
    #allocation2 [shape = 'u8[32768]{0}', space=vmem, size = 0x8000, scoped, tag = 'input window, operand 5, single buffered']
    #allocation3 [shape = 's32[1]{0}', space=sflag, size = 0x4, scoped, tag = 'scoped memory for _forward_jit.1']
    #allocation4 [shape = 'u8[32768]{0}', space=vmem, size = 0x8000, scoped, tag = 'input window, operand 9, single buffered']
    #allocation5 [shape = 's32[1]{0}', space=sflag, size = 0x4, scoped, tag = 'scoped memory for _forward_jit.1']
    #allocation6 [shape = 'u8[32768]{0}', space=vmem, size = 0x8000, scoped, tag = 'input window, operand 13, single buffered']
    %20 = vsyncpa [#allocation3], 0
    %21 = vsyncpa [#allocation5], 0
    // Predicated region
    $region2: #{_forward_jit.1} parent=1 // pred_check
      _
    $region3: #{_forward_jit.1} parent=1 // pred_check_branch
      %23 = sbr.rel (0) target = $region5
    $region4: #{_forward_jit.1} parent=1 // pred_region
      _
    $region5: #{_forward_jit.1} parent=1 // pred_fallthru
      _
    // Predicated region
    $region6: #{_forward_jit.1} parent=1 // pred_check
      _
    $region7: #{_forward_jit.1} parent=1 // pred_check_branch
      %25 = sbr.rel (0) target = $region9
    $region8: #{_forward_jit.1} parent=1 // pred_region
      _
    $region9: #{_forward_jit.1} parent=1 // pred_fallthru
      _
    // Predicated region
    $region10: #{_forward_jit.1} parent=1 // pred_check
      _
    $region11: #{_forward_jit.1} parent=1 // pred_check_branch
      %27 = sbr.rel (0) target = $region13
    $region12: #{_forward_jit.1} parent=1 // pred_region
      _
    $region13: #{_forward_jit.1} parent=1 // pred_fallthru
      _
    // Predicated region
    $region14: #{_forward_jit.1} parent=1 // pred_check
      _
    $region15: #{_forward_jit.1} parent=1 // pred_check_branch
      %29 = sbr.rel (0) target = $region17
    $region16: #{_forward_jit.1} parent=1 // pred_region
      _
    $region17: #{_forward_jit.1} parent=1 // pred_fallthru
      _
    // Predicated region
    $region18: #{_forward_jit.1} parent=1 // pred_check
      _
    $region19: #{_forward_jit.1} parent=1 // pred_check_branch
      %31 = sbr.rel (0) target = $region21
    $region20: #{_forward_jit.1} parent=1 // pred_region
      _
    $region21: #{_forward_jit.1} parent=1 // pred_fallthru
      _
    // Predicated region
    $region22: #{_forward_jit.1} parent=1 // pred_check
      _
    $region23: #{_forward_jit.1} parent=1 // pred_check_branch
      %33 = sbr.rel (0) target = $region25
    $region24: #{_forward_jit.1} parent=1 // pred_region
      %s35 = ssub.s32 1024, 1024
      %36 = vsyncadd [#allocation3], %s35
      %s37 = sshll.u32 [#allocation2], 4
      %s38 = int_to_ptr.vmem [resolvable:$true] %s37
      %43 = dma.hbm_to_vmem [thread:$0]  %s5, 1024, %s38, [#allocation3], 64, 64, 4
    $region25: #{_forward_jit.1} parent=1 // pred_fallthru
      _
    // Predicated region
    $region26: #{_forward_jit.1} parent=1 // pred_check
      _
    $region27: #{_forward_jit.1} parent=1 // pred_check_branch
      %45 = sbr.rel (0) target = $region29
    $region28: #{_forward_jit.1} parent=1 // pred_region
      _
    $region29: #{_forward_jit.1} parent=1 // pred_fallthru
      _
    // Predicated region
    $region30: #{_forward_jit.1} parent=1 // pred_check
      _
    $region31: #{_forward_jit.1} parent=1 // pred_check_branch
      %47 = sbr.rel (0) target = $region33
    $region32: #{_forward_jit.1} parent=1 // pred_region
      _
    $region33: #{_forward_jit.1} parent=1 // pred_fallthru
      _
    // Predicated region
    $region34: #{_forward_jit.1} parent=1 // pred_check
      _
    $region35: #{_forward_jit.1} parent=1 // pred_check_branch
      %49 = sbr.rel (0) target = $region37
    $region36: #{_forward_jit.1} parent=1 // pred_region
      _
    $region37: #{_forward_jit.1} parent=1 // pred_fallthru
      _
    // Predicated region
    $region38: #{_forward_jit.1} parent=1 // pred_check
      _
    $region39: #{_forward_jit.1} parent=1 // pred_check_branch
      %51 = sbr.rel (0) target = $region41
    $region40: #{_forward_jit.1} parent=1 // pred_region
      %s53 = ssub.s32 1024, 1024
      %54 = vsyncadd [#allocation5], %s53
      %s55 = sshll.u32 [#allocation4], 4
      %s56 = int_to_ptr.vmem [resolvable:$true] %s55
      %61 = dma.hbm_to_vmem [thread:$0]  %s9, 1024, %s56, [#allocation5], 64, 64, 4
    $region41: #{_forward_jit.1} parent=1 // pred_fallthru
      _
    // Predicated region
    $region42: #{_forward_jit.1} parent=1 // pred_check
      _
    $region43: #{_forward_jit.1} parent=1 // pred_check_branch
      %63 = sbr.rel (0) target = $region45
    $region44: #{_forward_jit.1} parent=1 // pred_region
      _
    $region45: #{_forward_jit.1} parent=1 // pred_fallthru
      _
    // Predicated region
    $region46: #{_forward_jit.1} parent=1 // pred_check
      _
    $region47: #{_forward_jit.1} parent=1 // pred_check_branch
      %65 = sbr.rel (0) target = $region49
    $region48: #{_forward_jit.1} parent=1 // pred_region
      _
    $region49: #{_forward_jit.1} parent=1 // pred_fallthru
      _
    // Predicated region
    $region50: #{_forward_jit.1} parent=1 // pred_check
      _
    $region51: #{_forward_jit.1} parent=1 // pred_check_branch
      %67 = sbr.rel (0) target = $region53
    $region52: #{_forward_jit.1} parent=1 // pred_region
      _
    $region53: #{_forward_jit.1} parent=1 // pred_fallthru
      _
    // Predicated region
    $region54: #{_forward_jit.1} parent=1 // pred_check
      _
    $region55: #{_forward_jit.1} parent=1 // pred_check_branch
      %69 = sbr.rel (0) target = $region57
    $region56: #{_forward_jit.1} parent=1 // pred_region
      %s71 = ssub.s32 1024, 1024
      %72 = vsyncadd [#allocation5], %s71
      %s73 = sshll.u32 [#allocation6], 4
      %s74 = int_to_ptr.vmem [resolvable:$true] %s73
      %79 = dma.hbm_to_vmem [thread:$0]  %s13, 1024, %s74, [#allocation5], 64, 64, 4
    $region57: #{_forward_jit.1} parent=1 // pred_fallthru
      _
    // Predicated region
    $region58: #{_forward_jit.1} parent=1 // pred_check
      _
    $region59: #{_forward_jit.1} parent=1 // pred_check_branch
      %81 = sbr.rel (0) target = $region61
    $region60: #{_forward_jit.1} parent=1 // pred_region
      _
    $region61: #{_forward_jit.1} parent=1 // pred_fallthru
      _
    // Predicated region
    $region62: #{_forward_jit.1} parent=1 // pred_check
      _
    $region63: #{_forward_jit.1} parent=1 // pred_check_branch
      %83 = sbr.rel (0) target = $region65
    $region64: #{_forward_jit.1} parent=1 // pred_region
      %84 = dma.done [#allocation3], 1024
    $region65: #{_forward_jit.1} parent=1 // pred_fallthru
      _
    // Predicated region
    $region66: #{_forward_jit.1} parent=1 // pred_check
      _
    $region67: #{_forward_jit.1} parent=1 // pred_check_branch
      %86 = sbr.rel (0) target = $region69
    $region68: #{_forward_jit.1} parent=1 // pred_region
      %87 = dma.done [#allocation5], 1024
    $region69: #{_forward_jit.1} parent=1 // pred_fallthru
      _
    // Predicated region
    $region70: #{_forward_jit.1} parent=1 // pred_check
      _
    $region71: #{_forward_jit.1} parent=1 // pred_check_branch
      %89 = sbr.rel (0) target = $region73
    $region72: #{_forward_jit.1} parent=1 // pred_region
      %90 = dma.done [#allocation5], 1024
    $region73: #{_forward_jit.1} parent=1 // pred_fallthru
      _
    %v92 = vld [vmem:[%s0] sm:$0xf]
    %v93 = vld [vmem:[%s0 + $0x4] sm:$0xf]
    %v94 = vld [vmem:[%s1] sm:$0xf]
    %v95 = vld [vmem:[%s1 + $0x4] sm:$0xf]
    %v96 = vld [vmem:[%s1 + $0x8] sm:$0xf]
    %v97 = vld [vmem:[%s1 + $0xc] sm:$0xf]
    %v98 = vld [vmem:[%s1 + $0x10] sm:$0xf]
    %v99 = vld [vmem:[%s1 + $0x14] sm:$0xf]
    %v100 = vld [vmem:[%s1 + $0x18] sm:$0xf]
    %v101 = vld [vmem:[%s1 + $0x1c] sm:$0xf]
    %v102 = vld [vmem:[%s1 + $0x20] sm:$0xf]
    %v103 = vld [vmem:[%s1 + $0x24] sm:$0xf]
    %v104 = vld [vmem:[%s1 + $0x28] sm:$0xf]
    %v105 = vld [vmem:[%s1 + $0x2c] sm:$0xf]
    %v106 = vld [vmem:[%s1 + $0x30] sm:$0xf]
    %v107 = vld [vmem:[%s1 + $0x34] sm:$0xf]
    %v108 = vld [vmem:[%s1 + $0x38] sm:$0xf]
    %v109 = vld [vmem:[%s1 + $0x3c] sm:$0xf]
    %v110 = vld [vmem:[%s2] sm:$0x1]
    %v112 = vlaneseq
    %v113 = vshrl.u32 %v112, 7
    %v114 = vsub.s32 0, %v113
    %v115 = vrot.slane %v110, %v114
    %v119 = vunpack.c.l.b16 %v92
    %v120 = vunpack.c.l.b16 %v93
    %v121 = vpack.c.b16 %v120, %v119
    %v139 = vunpack.c.l.b16 %v94
    %v140 = vunpack.c.l.b16 %v95
    %v141 = vunpack.c.l.b16 %v96
    %v142 = vunpack.c.l.b16 %v97
    %v143 = vunpack.c.l.b16 %v98
    %v144 = vunpack.c.l.b16 %v99
    %v145 = vunpack.c.l.b16 %v100
    %v146 = vunpack.c.l.b16 %v101
    %v147 = vunpack.c.l.b16 %v102
    %v148 = vunpack.c.l.b16 %v103
    %v149 = vunpack.c.l.b16 %v104
    %v150 = vunpack.c.l.b16 %v105
    %v151 = vunpack.c.l.b16 %v106
    %v152 = vunpack.c.l.b16 %v107
    %v153 = vunpack.c.l.b16 %v108
    %v154 = vunpack.c.l.b16 %v109
    %v155 = vpack.c.b16 %v140, %v139
    %v156 = vpack.c.b16 %v142, %v141
    %v157 = vpack.c.b16 %v144, %v143
    %v158 = vpack.c.b16 %v146, %v145
    %v159 = vpack.c.b16 %v148, %v147
    %v160 = vpack.c.b16 %v150, %v149
    %v161 = vpack.c.b16 %v152, %v151
    %v162 = vpack.c.b16 %v154, %v153
    %171 = vmatprep.subr.bf16.mxu0 0
    %172 = vmatpush1.bf16.msra.mxu0 %v155
    %173 = vmatprep.subr.bf16.mxu0 0
    %174 = vmatpush1.bf16.msra.mxu0 %v156
    %175 = vmatprep.subr.bf16.mxu0 0
    %176 = vmatpush1.bf16.msra.mxu0 %v157
    %177 = vmatprep.subr.bf16.mxu0 0
    %178 = vmatpush1.bf16.msra.mxu0 %v158
    %179 = vmatprep.subr.bf16.mxu0 0
    %180 = vmatpush1.bf16.msra.mxu0 %v159
    %181 = vmatprep.subr.bf16.mxu0 0
    %182 = vmatpush1.bf16.msra.mxu0 %v160
    %183 = vmatprep.subr.bf16.mxu0 0
    %184 = vmatpush1.bf16.msra.mxu0 %v161
    %185 = vmatprep.subr.bf16.mxu0 0
    %186 = vmatpush1.bf16.msra.mxu0 %v162
    %187 = vmatprep.subr.bf16.mxu0 0
    %188 = vmatpush1.bf16.msra.mxu0 0
    %189 = vmatprep.subr.bf16.mxu0 0
    %190 = vmatpush1.bf16.msra.mxu0 0
    %191 = vmatprep.subr.bf16.mxu0 0
    %192 = vmatpush1.bf16.msra.mxu0 0
    %193 = vmatprep.subr.bf16.mxu0 0
    %194 = vmatpush1.bf16.msra.mxu0 0
    %195 = vmatprep.subr.bf16.mxu0 0
    %196 = vmatpush1.bf16.msra.mxu0 0
    %197 = vmatprep.subr.bf16.mxu0 0
    %198 = vmatpush1.bf16.msra.mxu0 0
    %199 = vmatprep.subr.bf16.mxu0 0
    %200 = vmatpush1.bf16.msra.mxu0 0
    %201 = vmatprep.subr.bf16.mxu0 0
    %202 = vmatpush1.bf16.msra.mxu0 0
    %203 = vmatprep.mubr.bf16.mxu0 0
    %204 = vmatmul.mubr.bf16.gmra.mrb[0].mxu0 %v121
    %v205 = vpop.f32.mrb[0].mxu0
    %v206 = vadd.f32 %v115, %v205
    %v207 = vpop.f32.mrb[0].mxu0
    %v208 = vpop.f32.mrb[0].mxu0
    %v209 = vadd.f32 %v115, %v208
    %v210 = vpop.f32.mrb[0].mxu0
    %211 = vdwg.mxu0
    %212 = vadd.xlane.f32.xlu0 %v206
    %v213 = vpop.xlane.xlu0 %212
    %214 = vadd.xlane.f32.xlu0 %v209
    %v215 = vpop.xlane.xlu0 %214
    %v216 = vmul.f32 %v206, %v206
    %v217 = vmul.f32 %v209, %v209
    %218 = vadd.xlane.f32.xlu0 %v216
    %v219 = vpop.xlane.xlu0 %218
    %220 = vadd.xlane.f32.xlu0 %v217
    %v221 = vpop.xlane.xlu0 %220
    %v222 = vmul.f32 %v213, 0.03125
    %v223 = vmul.f32 %v215, 0.03125
    %v224 = vmul.f32 %v219, 0.03125
    %v225 = vmul.f32 %v221, 0.03125
    %v226 = vmul.f32 %v222, %v222
    %v227 = vmul.f32 %v223, %v223
    %v228 = vsub.f32 %v224, %v226
    %v229 = vsub.f32 %v225, %v227
    %v230 = vmax.f32 %v228, 0.0
    %v231 = vmax.f32 %v229, 0.0
    %v232 = vld [vmem:[%s3] sm:$0x1]
    %v233 = vadd.f32 %v230, 1e-05
    %v234 = vadd.f32 %v231, 1e-05
    %v235 = vrsqrt.pop %v233
    %v236 = vrsqrt.pop %v234
    %v238 = vlaneseq
    %v239 = vshrl.u32 %v238, 7
    %v240 = vsub.s32 0, %v239
    %v241 = vrot.slane %v232, %v240
    %v243 = vmul.f32 %v241, %v235
    %v244 = vmul.f32 %v241, %v236
    %v245 = vsub.f32 %v206, %v222
    %v246 = vsub.f32 %v209, %v223
    %v247 = vmul.f32 %v245, %v243
    %v248 = vmul.f32 %v246, %v244
    %v249 = vld [vmem:[%s4] sm:$0x1]
    %v251 = vlaneseq
    %v252 = vshrl.u32 %v251, 7
    %v253 = vsub.s32 0, %v252
    %v254 = vrot.slane %v249, %v253
    %v256 = vadd.f32 %v247, %v254
    %v257 = vadd.f32 %v248, %v254
    %v258 = vmul.f32 %v256, 0.01
    %v259 = vmul.f32 %v257, 0.01
    %v260 = vmax.f32 %v256, %v258
    %v261 = vmax.f32 %v257, %v259
    %v262 = vpack.c.bf16 %v261, %v260
    %v263 = vld [vmem:[#allocation2] sm:$0xf]
    %v264 = vld [vmem:[#allocation2 + $0x4] sm:$0xf]
    %v265 = vld [vmem:[#allocation2 + $0x8] sm:$0xf]
    %v266 = vld [vmem:[#allocation2 + $0xc] sm:$0xf]
    %v267 = vld [vmem:[#allocation2 + $0x10] sm:$0xf]
    %v268 = vld [vmem:[#allocation2 + $0x14] sm:$0xf]
    %v269 = vld [vmem:[#allocation2 + $0x18] sm:$0xf]
    %v270 = vld [vmem:[#allocation2 + $0x1c] sm:$0xf]
    %v271 = vld [vmem:[#allocation2 + $0x20] sm:$0xf]
    %v272 = vld [vmem:[#allocation2 + $0x24] sm:$0xf]
    %v273 = vld [vmem:[#allocation2 + $0x28] sm:$0xf]
    %v274 = vld [vmem:[#allocation2 + $0x2c] sm:$0xf]
    %v275 = vld [vmem:[#allocation2 + $0x30] sm:$0xf]
    %v276 = vld [vmem:[#allocation2 + $0x34] sm:$0xf]
    %v277 = vld [vmem:[#allocation2 + $0x38] sm:$0xf]
    %v278 = vld [vmem:[#allocation2 + $0x3c] sm:$0xf]
    %v279 = vld [vmem:[%s6] sm:$0x1]
    %v281 = vlaneseq
    %v282 = vshrl.u32 %v281, 7
    %v283 = vsub.s32 0, %v282
    %v284 = vrot.slane %v279, %v283
    %v302 = vunpack.c.l.b16 %v263
    %v303 = vunpack.c.l.b16 %v264
    %v304 = vunpack.c.l.b16 %v265
    %v305 = vunpack.c.l.b16 %v266
    %v306 = vunpack.c.l.b16 %v267
    %v307 = vunpack.c.l.b16 %v268
    %v308 = vunpack.c.l.b16 %v269
    %v309 = vunpack.c.l.b16 %v270
    %v310 = vunpack.c.l.b16 %v271
    %v311 = vunpack.c.l.b16 %v272
    %v312 = vunpack.c.l.b16 %v273
    %v313 = vunpack.c.l.b16 %v274
    %v314 = vunpack.c.l.b16 %v275
    %v315 = vunpack.c.l.b16 %v276
    %v316 = vunpack.c.l.b16 %v277
    %v317 = vunpack.c.l.b16 %v278
    %v318 = vpack.c.b16 %v303, %v302
    %v319 = vpack.c.b16 %v305, %v304
    %v320 = vpack.c.b16 %v307, %v306
    %v321 = vpack.c.b16 %v309, %v308
    %v322 = vpack.c.b16 %v311, %v310
    %v323 = vpack.c.b16 %v313, %v312
    %v324 = vpack.c.b16 %v315, %v314
    %v325 = vpack.c.b16 %v317, %v316
    %334 = vmatprep.subr.bf16.mxu0 0
    %335 = vmatpush1.bf16.msra.mxu0 %v318
    %336 = vmatprep.subr.bf16.mxu0 0
    %337 = vmatpush1.bf16.msra.mxu0 %v319
    %338 = vmatprep.subr.bf16.mxu0 0
    %339 = vmatpush1.bf16.msra.mxu0 %v320
    %340 = vmatprep.subr.bf16.mxu0 0
    %341 = vmatpush1.bf16.msra.mxu0 %v321
    %342 = vmatprep.subr.bf16.mxu0 0
    %343 = vmatpush1.bf16.msra.mxu0 %v322
    %344 = vmatprep.subr.bf16.mxu0 0
    %345 = vmatpush1.bf16.msra.mxu0 %v323
    %346 = vmatprep.subr.bf16.mxu0 0
    %347 = vmatpush1.bf16.msra.mxu0 %v324
    %348 = vmatprep.subr.bf16.mxu0 0
    %349 = vmatpush1.bf16.msra.mxu0 %v325
    %350 = vmatprep.subr.bf16.mxu0 0
    %351 = vmatpush1.bf16.msra.mxu0 0
    %352 = vmatprep.subr.bf16.mxu0 0
    %353 = vmatpush1.bf16.msra.mxu0 0
    %354 = vmatprep.subr.bf16.mxu0 0
    %355 = vmatpush1.bf16.msra.mxu0 0
    %356 = vmatprep.subr.bf16.mxu0 0
    %357 = vmatpush1.bf16.msra.mxu0 0
    %358 = vmatprep.subr.bf16.mxu0 0
    %359 = vmatpush1.bf16.msra.mxu0 0
    %360 = vmatprep.subr.bf16.mxu0 0
    %361 = vmatpush1.bf16.msra.mxu0 0
    %362 = vmatprep.subr.bf16.mxu0 0
    %363 = vmatpush1.bf16.msra.mxu0 0
    %364 = vmatprep.subr.bf16.mxu0 0
    %365 = vmatpush1.bf16.msra.mxu0 0
    %366 = vmatprep.mubr.bf16.mxu0 0
    %367 = vmatmul.mubr.bf16.gmra.mrb[0].mxu0 %v262
    %v368 = vpop.f32.mrb[0].mxu0
    %v369 = vadd.f32 %v284, %v368
    %v370 = vpop.f32.mrb[0].mxu0
    %v371 = vpop.f32.mrb[0].mxu0
    %v372 = vadd.f32 %v284, %v371
    %v373 = vpop.f32.mrb[0].mxu0
    %374 = vdwg.mxu0
    %375 = vadd.xlane.f32.xlu0 %v369
    %v376 = vpop.xlane.xlu0 %375
    %377 = vadd.xlane.f32.xlu0 %v372
    %v378 = vpop.xlane.xlu0 %377
    %v379 = vmul.f32 %v369, %v369
    %v380 = vmul.f32 %v372, %v372
    %381 = vadd.xlane.f32.xlu0 %v379
    %v382 = vpop.xlane.xlu0 %381
    %383 = vadd.xlane.f32.xlu0 %v380
    %v384 = vpop.xlane.xlu0 %383
    %v385 = vmul.f32 %v376, 0.03125
    %v386 = vmul.f32 %v378, 0.03125
    %v387 = vmul.f32 %v382, 0.03125
    %v388 = vmul.f32 %v384, 0.03125
    %v389 = vmul.f32 %v385, %v385
    %v390 = vmul.f32 %v386, %v386
    %v391 = vsub.f32 %v387, %v389
    %v392 = vsub.f32 %v388, %v390
    %v393 = vmax.f32 %v391, 0.0
    %v394 = vmax.f32 %v392, 0.0
    %v395 = vld [vmem:[%s7] sm:$0x1]
    %v396 = vadd.f32 %v393, 1e-05
    %v397 = vadd.f32 %v394, 1e-05
    %v398 = vrsqrt.pop %v396
    %v399 = vrsqrt.pop %v397
    %v401 = vlaneseq
    %v402 = vshrl.u32 %v401, 7
    %v403 = vsub.s32 0, %v402
    %v404 = vrot.slane %v395, %v403
    %v406 = vmul.f32 %v404, %v398
    %v407 = vmul.f32 %v404, %v399
    %v408 = vsub.f32 %v369, %v385
    %v409 = vsub.f32 %v372, %v386
    %v410 = vmul.f32 %v408, %v406
    %v411 = vmul.f32 %v409, %v407
    %v412 = vld [vmem:[%s8] sm:$0x1]
    %v414 = vlaneseq
    %v415 = vshrl.u32 %v414, 7
    %v416 = vsub.s32 0, %v415
    %v417 = vrot.slane %v412, %v416
    %v419 = vadd.f32 %v410, %v417
    %v420 = vadd.f32 %v411, %v417
    %v421 = vmul.f32 %v419, 0.01
    %v422 = vmul.f32 %v420, 0.01
    %v423 = vmax.f32 %v419, %v421
    %v424 = vmax.f32 %v420, %v422
    %v425 = vpack.c.bf16 %v424, %v423
    %v426 = vld [vmem:[#allocation4] sm:$0xf]
    %v427 = vld [vmem:[#allocation4 + $0x4] sm:$0xf]
    %v428 = vld [vmem:[#allocation4 + $0x8] sm:$0xf]
    %v429 = vld [vmem:[#allocation4 + $0xc] sm:$0xf]
    %v430 = vld [vmem:[#allocation4 + $0x10] sm:$0xf]
    %v431 = vld [vmem:[#allocation4 + $0x14] sm:$0xf]
    %v432 = vld [vmem:[#allocation4 + $0x18] sm:$0xf]
    %v433 = vld [vmem:[#allocation4 + $0x1c] sm:$0xf]
    %v434 = vld [vmem:[#allocation4 + $0x20] sm:$0xf]
    %v435 = vld [vmem:[#allocation4 + $0x24] sm:$0xf]
    %v436 = vld [vmem:[#allocation4 + $0x28] sm:$0xf]
    %v437 = vld [vmem:[#allocation4 + $0x2c] sm:$0xf]
    %v438 = vld [vmem:[#allocation4 + $0x30] sm:$0xf]
    %v439 = vld [vmem:[#allocation4 + $0x34] sm:$0xf]
    %v440 = vld [vmem:[#allocation4 + $0x38] sm:$0xf]
    %v441 = vld [vmem:[#allocation4 + $0x3c] sm:$0xf]
    %v442 = vld [vmem:[%s10] sm:$0x1]
    %v444 = vlaneseq
    %v445 = vshrl.u32 %v444, 7
    %v446 = vsub.s32 0, %v445
    %v447 = vrot.slane %v442, %v446
    %v465 = vunpack.c.l.b16 %v426
    %v466 = vunpack.c.l.b16 %v427
    %v467 = vunpack.c.l.b16 %v428
    %v468 = vunpack.c.l.b16 %v429
    %v469 = vunpack.c.l.b16 %v430
    %v470 = vunpack.c.l.b16 %v431
    %v471 = vunpack.c.l.b16 %v432
    %v472 = vunpack.c.l.b16 %v433
    %v473 = vunpack.c.l.b16 %v434
    %v474 = vunpack.c.l.b16 %v435
    %v475 = vunpack.c.l.b16 %v436
    %v476 = vunpack.c.l.b16 %v437
    %v477 = vunpack.c.l.b16 %v438
    %v478 = vunpack.c.l.b16 %v439
    %v479 = vunpack.c.l.b16 %v440
    %v480 = vunpack.c.l.b16 %v441
    %v481 = vpack.c.b16 %v466, %v465
    %v482 = vpack.c.b16 %v468, %v467
    %v483 = vpack.c.b16 %v470, %v469
    %v484 = vpack.c.b16 %v472, %v471
    %v485 = vpack.c.b16 %v474, %v473
    %v486 = vpack.c.b16 %v476, %v475
    %v487 = vpack.c.b16 %v478, %v477
    %v488 = vpack.c.b16 %v480, %v479
    %497 = vmatprep.subr.bf16.mxu0 0
    %498 = vmatpush1.bf16.msra.mxu0 %v481
    %499 = vmatprep.subr.bf16.mxu0 0
    %500 = vmatpush1.bf16.msra.mxu0 %v482
    %501 = vmatprep.subr.bf16.mxu0 0
    %502 = vmatpush1.bf16.msra.mxu0 %v483
    %503 = vmatprep.subr.bf16.mxu0 0
    %504 = vmatpush1.bf16.msra.mxu0 %v484
    %505 = vmatprep.subr.bf16.mxu0 0
    %506 = vmatpush1.bf16.msra.mxu0 %v485
    %507 = vmatprep.subr.bf16.mxu0 0
    %508 = vmatpush1.bf16.msra.mxu0 %v486
    %509 = vmatprep.subr.bf16.mxu0 0
    %510 = vmatpush1.bf16.msra.mxu0 %v487
    %511 = vmatprep.subr.bf16.mxu0 0
    %512 = vmatpush1.bf16.msra.mxu0 %v488
    %513 = vmatprep.subr.bf16.mxu0 0
    %514 = vmatpush1.bf16.msra.mxu0 0
    %515 = vmatprep.subr.bf16.mxu0 0
    %516 = vmatpush1.bf16.msra.mxu0 0
    %517 = vmatprep.subr.bf16.mxu0 0
    %518 = vmatpush1.bf16.msra.mxu0 0
    %519 = vmatprep.subr.bf16.mxu0 0
    %520 = vmatpush1.bf16.msra.mxu0 0
    %521 = vmatprep.subr.bf16.mxu0 0
    %522 = vmatpush1.bf16.msra.mxu0 0
    %523 = vmatprep.subr.bf16.mxu0 0
    %524 = vmatpush1.bf16.msra.mxu0 0
    %525 = vmatprep.subr.bf16.mxu0 0
    %526 = vmatpush1.bf16.msra.mxu0 0
    %527 = vmatprep.subr.bf16.mxu0 0
    %528 = vmatpush1.bf16.msra.mxu0 0
    %529 = vmatprep.mubr.bf16.mxu0 0
    %530 = vmatmul.mubr.bf16.gmra.mrb[0].mxu0 %v425
    %v531 = vpop.f32.mrb[0].mxu0
    %v532 = vadd.f32 %v447, %v531
    %v533 = vpop.f32.mrb[0].mxu0
    %v534 = vpop.f32.mrb[0].mxu0
    %v535 = vadd.f32 %v447, %v534
    %v536 = vpop.f32.mrb[0].mxu0
    %537 = vdwg.mxu0
    %538 = vadd.xlane.f32.xlu0 %v532
    %v539 = vpop.xlane.xlu0 %538
    %540 = vadd.xlane.f32.xlu0 %v535
    %v541 = vpop.xlane.xlu0 %540
    %v542 = vmul.f32 %v532, %v532
    %v543 = vmul.f32 %v535, %v535
    %544 = vadd.xlane.f32.xlu0 %v542
    %v545 = vpop.xlane.xlu0 %544
    %546 = vadd.xlane.f32.xlu0 %v543
    %v547 = vpop.xlane.xlu0 %546
    %v548 = vmul.f32 %v539, 0.03125
    %v549 = vmul.f32 %v541, 0.03125
    %v550 = vmul.f32 %v545, 0.03125
    %v551 = vmul.f32 %v547, 0.03125
    %v552 = vmul.f32 %v548, %v548
    %v553 = vmul.f32 %v549, %v549
    %v554 = vsub.f32 %v550, %v552
    %v555 = vsub.f32 %v551, %v553
    %v556 = vmax.f32 %v554, 0.0
    %v557 = vmax.f32 %v555, 0.0
    %v558 = vld [vmem:[%s11] sm:$0x1]
    %v559 = vadd.f32 %v556, 1e-05
    %v560 = vadd.f32 %v557, 1e-05
    %v561 = vrsqrt.pop %v559
    %v562 = vrsqrt.pop %v560
    %v564 = vlaneseq
    %v565 = vshrl.u32 %v564, 7
    %v566 = vsub.s32 0, %v565
    %v567 = vrot.slane %v558, %v566
    %v569 = vmul.f32 %v567, %v561
    %v570 = vmul.f32 %v567, %v562
    %v571 = vsub.f32 %v532, %v548
    %v572 = vsub.f32 %v535, %v549
    %v573 = vmul.f32 %v571, %v569
    %v574 = vmul.f32 %v572, %v570
    %v575 = vld [vmem:[%s12] sm:$0x1]
    %v577 = vlaneseq
    %v578 = vshrl.u32 %v577, 7
    %v579 = vsub.s32 0, %v578
    %v580 = vrot.slane %v575, %v579
    %v582 = vadd.f32 %v573, %v580
    %v583 = vadd.f32 %v574, %v580
    %v584 = vmul.f32 %v582, 0.01
    %v585 = vmul.f32 %v583, 0.01
    %v586 = vmax.f32 %v582, %v584
    %v587 = vmax.f32 %v583, %v585
    %v588 = vpack.c.bf16 %v587, %v586
    %v589 = vld [vmem:[#allocation6] sm:$0xf]
    %v590 = vld [vmem:[#allocation6 + $0x4] sm:$0xf]
    %v591 = vld [vmem:[#allocation6 + $0x8] sm:$0xf]
    %v592 = vld [vmem:[#allocation6 + $0xc] sm:$0xf]
    %v593 = vld [vmem:[#allocation6 + $0x10] sm:$0xf]
    %v594 = vld [vmem:[#allocation6 + $0x14] sm:$0xf]
    %v595 = vld [vmem:[#allocation6 + $0x18] sm:$0xf]
    %v596 = vld [vmem:[#allocation6 + $0x1c] sm:$0xf]
    %v597 = vld [vmem:[#allocation6 + $0x20] sm:$0xf]
    %v598 = vld [vmem:[#allocation6 + $0x24] sm:$0xf]
    %v599 = vld [vmem:[#allocation6 + $0x28] sm:$0xf]
    %v600 = vld [vmem:[#allocation6 + $0x2c] sm:$0xf]
    %v601 = vld [vmem:[#allocation6 + $0x30] sm:$0xf]
    %v602 = vld [vmem:[#allocation6 + $0x34] sm:$0xf]
    %v603 = vld [vmem:[#allocation6 + $0x38] sm:$0xf]
    %v604 = vld [vmem:[#allocation6 + $0x3c] sm:$0xf]
    %v605 = vld [vmem:[%s14] sm:$0x1]
    %v607 = vlaneseq
    %v608 = vshrl.u32 %v607, 7
    %v609 = vsub.s32 0, %v608
    %v610 = vrot.slane %v605, %v609
    %v628 = vunpack.c.l.b16 %v589
    %v629 = vunpack.c.l.b16 %v590
    %v630 = vunpack.c.l.b16 %v591
    %v631 = vunpack.c.l.b16 %v592
    %v632 = vunpack.c.l.b16 %v593
    %v633 = vunpack.c.l.b16 %v594
    %v634 = vunpack.c.l.b16 %v595
    %v635 = vunpack.c.l.b16 %v596
    %v636 = vunpack.c.l.b16 %v597
    %v637 = vunpack.c.l.b16 %v598
    %v638 = vunpack.c.l.b16 %v599
    %v639 = vunpack.c.l.b16 %v600
    %v640 = vunpack.c.l.b16 %v601
    %v641 = vunpack.c.l.b16 %v602
    %v642 = vunpack.c.l.b16 %v603
    %v643 = vunpack.c.l.b16 %v604
    %v644 = vpack.c.b16 %v629, %v628
    %v645 = vpack.c.b16 %v631, %v630
    %v646 = vpack.c.b16 %v633, %v632
    %v647 = vpack.c.b16 %v635, %v634
    %v648 = vpack.c.b16 %v637, %v636
    %v649 = vpack.c.b16 %v639, %v638
    %v650 = vpack.c.b16 %v641, %v640
    %v651 = vpack.c.b16 %v643, %v642
    %660 = vmatprep.subr.bf16.mxu0 0
    %661 = vmatpush1.bf16.msra.mxu0 %v644
    %662 = vmatprep.subr.bf16.mxu0 0
    %663 = vmatpush1.bf16.msra.mxu0 %v645
    %664 = vmatprep.subr.bf16.mxu0 0
    %665 = vmatpush1.bf16.msra.mxu0 %v646
    %666 = vmatprep.subr.bf16.mxu0 0
    %667 = vmatpush1.bf16.msra.mxu0 %v647
    %668 = vmatprep.subr.bf16.mxu0 0
    %669 = vmatpush1.bf16.msra.mxu0 %v648
    %670 = vmatprep.subr.bf16.mxu0 0
    %671 = vmatpush1.bf16.msra.mxu0 %v649
    %672 = vmatprep.subr.bf16.mxu0 0
    %673 = vmatpush1.bf16.msra.mxu0 %v650
    %674 = vmatprep.subr.bf16.mxu0 0
    %675 = vmatpush1.bf16.msra.mxu0 %v651
    %676 = vmatprep.subr.bf16.mxu0 0
    %677 = vmatpush1.bf16.msra.mxu0 0
    %678 = vmatprep.subr.bf16.mxu0 0
    %679 = vmatpush1.bf16.msra.mxu0 0
    %680 = vmatprep.subr.bf16.mxu0 0
    %681 = vmatpush1.bf16.msra.mxu0 0
    %682 = vmatprep.subr.bf16.mxu0 0
    %683 = vmatpush1.bf16.msra.mxu0 0
    %684 = vmatprep.subr.bf16.mxu0 0
    %685 = vmatpush1.bf16.msra.mxu0 0
    %686 = vmatprep.subr.bf16.mxu0 0
    %687 = vmatpush1.bf16.msra.mxu0 0
    %688 = vmatprep.subr.bf16.mxu0 0
    %689 = vmatpush1.bf16.msra.mxu0 0
    %690 = vmatprep.subr.bf16.mxu0 0
    %691 = vmatpush1.bf16.msra.mxu0 0
    %692 = vmatprep.mubr.bf16.mxu0 0
    %693 = vmatmul.mubr.bf16.gmra.mrb[0].mxu0 %v588
    %v694 = vpop.f32.mrb[0].mxu0
    %v695 = vadd.f32 %v610, %v694
    %v696 = vpop.f32.mrb[0].mxu0
    %v697 = vpop.f32.mrb[0].mxu0
    %v698 = vadd.f32 %v610, %v697
    %v699 = vpop.f32.mrb[0].mxu0
    %700 = vdwg.mxu0
    %701 = vst [vmem:[%s15] sm:$0xff] %v695
    %702 = vst [vmem:[%s15 + $0x8] sm:$0xff] %v698
    // Predicated region
    $region74: #{_forward_jit.1} parent=1 // pred_check
      _
    $region75: #{_forward_jit.1} parent=1 // pred_check_branch
      %704 = sbr.rel (0) target = $region77
    $region76: #{_forward_jit.1} parent=1 // pred_region
      _
    $region77: #{_forward_jit.1} parent=1 // pred_fallthru
      _
    // Predicated region
    $region78: #{_forward_jit.1} parent=1 // pred_check
      _
    $region79: #{_forward_jit.1} parent=1 // pred_check_branch
      %706 = sbr.rel (0) target = $region81
    $region80: #{_forward_jit.1} parent=1 // pred_region
      _
    $region81: #{_forward_jit.1} parent=1 // pred_fallthru
      _
    %707 = vsyncpa [#allocation3], 1
    %708 = vsyncpa [#allocation5], 1

</llo_original>
